<compile_context>
chip_gen: v6e
topology: v6e:2x2x1
jax: 0.10.0
libtpu: 0.0.40
codegen_flags: <defaults>
</compile_context>

<pallas_src>
import functools

import jax
import jax.numpy as jnp
from jax.experimental import pallas as pl
from jax.experimental.pallas import tpu as pltpu


def conv_oblong_kernel(x_ref, w_ref, shift_ref, o_ref, *,
                       B, H, W, KH, KW, P, Cin, Cout, matmul_dtype):
    """One batch tile per grid step.

    x_ref:     (B, H+KH-1, W+KW-1, Cin)  zero-padded NHWC input tile (VMEM)
    w_ref:     (KH*KW*Cin, Cout)         im2col-ordered weight, BN scale folded in
    shift_ref: (1, Cout)                 beta + (conv_bias - mean) * gamma/sqrt(var+eps)
    o_ref:     (B, H//P, W//P, Cout)     pooled output tile
    """
    HP, WP = H // P, W // P
    M = B * H * W

    # ---- im2col as a register value: no VMEM scratch round trip ----
    # Each column group is one shifted window sliced straight from the ref
    # (one load per patch column, live range bounded to this loop).
    cols = []
    for kh in range(KH):
        for kw in range(KW):
            sl = x_ref[:, kh:kh + H, kw:kw + W, :]            # (B, H, W, Cin)
            cols.append(sl.reshape(M, Cin).astype(matmul_dtype))
    patch = jnp.concatenate(cols, axis=-1)                    # (M, KH*KW*Cin)

    # ---- single fat MXU matmul, f32 accumulate (BN scale already in w_ref) ----
    acc = jnp.dot(patch, w_ref[...], preferred_element_type=jnp.float32)  # (M, Cout)

    # ---- fused conv-bias + BN shift, then ReLU (scale folded into weights) ----
    y = jnp.maximum(acc + shift_ref[...], 0.0)                # (M, Cout)

    # ---- MaxPool2d(P): vectorized over all windows, one dense store ----
    y5 = y.reshape(B, HP, P, W, Cout)
    m = y5[:, :, 0]
    for p in range(1, P):
        m = jnp.maximum(m, y5[:, :, p])                       # (B, HP, W, Cout)
    m5 = m.reshape(B, HP, WP, P, Cout)
    r = m5[:, :, :, 0]
    for p in range(1, P):
        r = jnp.maximum(r, m5[:, :, :, p])                    # (B, HP, WP, Cout)

    o_ref[...] = r.astype(o_ref.dtype)                        # single store


def conv_oblong_forward(x_nchw, weight_oihw, conv_bias,
                        gamma, beta, running_mean, running_var,
                        eps, pool_size, *, block_batch=1,
                        matmul_dtype=jnp.float32):
    N, Cin, H, W = x_nchw.shape
    Cout, _, KH, KW = weight_oihw.shape
    # Same-size conv assumed (matches PyTorch only for odd kernel dims).
    assert KH % 2 == 1 and KW % 2 == 1, "odd kernel dims required"
    P = 1 if pool_size is None else pool_size
    assert H % P == 0 and W % P == 0, "spatial dims must be divisible by pool_size"
    HP, WP = H // P, W // P
    ph, pw = KH // 2, KW // 2
    Hp, Wp = H + 2 * ph, W + 2 * pw

    B_TILE = min(block_batch, N)
    assert N % B_TILE == 0
    # grid has >= 2 steps -> input/output DMA overlaps compute; batch axis is
    # "parallel" so it shards across the 2 TensorCores on v7x.

    # NCHW -> NHWC + zero padding (glue).
    # TODO(synk): fuse this transpose+pad into the kernel for production sizes.
    x = jnp.transpose(x_nchw, (0, 2, 3, 1)).astype(jnp.float32)
    xp = jnp.pad(x, ((0, 0), (ph, ph), (pw, pw), (0, 0)))

    # Fold conv bias + BatchNorm (eval running stats) into the weights / a shift:
    #   y = (gamma*inv_std) * (conv + b - mean) + beta
    #     = conv @ (W * scale) + [beta + (b - mean) * scale]
    inv_std = 1.0 / jnp.sqrt(running_var.astype(jnp.float32) + eps)
    scale = (gamma.astype(jnp.float32) * inv_std)                        # (Cout,)
    w2 = (jnp.transpose(weight_oihw, (2, 3, 1, 0))                       # (KH,KW,Cin,Cout)
          .reshape(KH * KW * Cin, Cout).astype(jnp.float32)
          * scale[None, :]).astype(matmul_dtype)                         # scale folded in
    shift = (beta.astype(jnp.float32)
             + (conv_bias.astype(jnp.float32) - running_mean.astype(jnp.float32))
             * scale).reshape(1, Cout)

    kernel = functools.partial(
        conv_oblong_kernel, B=B_TILE, H=H, W=W, KH=KH, KW=KW, P=P,
        Cin=Cin, Cout=Cout, matmul_dtype=matmul_dtype)

    out_nhwc = pl.pallas_call(
        kernel,
        out_shape=jax.ShapeDtypeStruct((N, HP, WP, Cout), jnp.float32),
        grid=(N // B_TILE,),
        in_specs=[
            pl.BlockSpec((B_TILE, Hp, Wp, Cin), lambda n: (n, 0, 0, 0)),
            pl.BlockSpec((KH * KW * Cin, Cout), lambda n: (0, 0)),
            pl.BlockSpec((1, Cout), lambda n: (0, 0)),
        ],
        out_specs=pl.BlockSpec((B_TILE, HP, WP, Cout), lambda n: (n, 0, 0, 0)),
        compiler_params=pltpu.CompilerParams(
            dimension_semantics=("parallel",),
            vmem_limit_bytes=32 * 1024 * 1024),
    )(xp, w2, shift)

    # TODO(synk): Dropout is identity in eval mode; training-mode dropout not modeled.
    # NHWC -> NCHW, then torch-style squeeze(2) (removes the dim only if it is 1).
    out_nchw = jnp.transpose(out_nhwc, (0, 3, 1, 2))                     # (N, Cout, HP, WP)
    if HP == 1:
        return jnp.squeeze(out_nchw, axis=2)                             # (N, Cout, WP)
    return out_nchw


def reference_forward(x_nchw, weight_oihw, conv_bias,
                      gamma, beta, running_mean, running_var, eps, P):
    KH, KW = weight_oihw.shape[2], weight_oihw.shape[3]
    conv = jax.lax.conv_general_dilated(
        x_nchw, weight_oihw, window_strides=(1, 1),
        padding=((KH // 2, KH // 2), (KW // 2, KW // 2)),
        dimension_numbers=('NCHW', 'OIHW', 'NCHW'))
    conv = conv + conv_bias[None, :, None, None]
    bn = gamma[None, :, None, None] * (conv - running_mean[None, :, None, None]) \
        / jnp.sqrt(running_var[None, :, None, None] + eps) \
        + beta[None, :, None, None]
    act = jnp.maximum(bn, 0.0)
    pooled = jax.lax.reduce_window(
        act, -jnp.inf, jax.lax.max,
        window_dimensions=(1, 1, P, P), window_strides=(1, 1, P, P),
        padding='VALID')
    if pooled.shape[2] == 1:
        pooled = jnp.squeeze(pooled, axis=2)
    return pooled


if __name__ == "__main__":
    # Shapes consistent with the module:
    #   input_channels=4, output_channels=8, vertical_shape=3, horizontal_shape=5,
    #   pool_size=8, input x: (N=2, C=4, H=8, W=16)  -> output (2, 8, 2)
    N, Cin, H, W = 2, 4, 8, 16
    Cout, KH, KW = 8, 3, 5
    pool_size = 8
    eps = 1e-5

    key = jax.random.PRNGKey(0)
    k_x, k_w, k_b, k_g, k_be, k_m, k_v = jax.random.split(key, 7)

    x = jax.random.normal(k_x, (N, Cin, H, W), dtype=jnp.float32)
    conv_w = 0.1 * jax.random.normal(k_w, (Cout, Cin, KH, KW), dtype=jnp.float32)
    conv_b = 0.1 * jax.random.normal(k_b, (Cout,), dtype=jnp.float32)
    gamma = 1.0 + 0.1 * jax.random.normal(k_g, (Cout,), dtype=jnp.float32)
    beta = 0.1 * jax.random.normal(k_be, (Cout,), dtype=jnp.float32)
    running_mean = 0.05 * jax.random.normal(k_m, (Cout,), dtype=jnp.float32)
    running_var = 1.0 + 0.1 * jax.random.uniform(k_v, (Cout,), dtype=jnp.float32)

    out = conv_oblong_forward(x, conv_w, conv_b, gamma, beta,
                              running_mean, running_var, eps, pool_size)
    out = jax.block_until_ready(out)

    ref = reference_forward(x, conv_w, conv_b, gamma, beta,
                            running_mean, running_var, eps, pool_size)
    ref = jax.block_until_ready(ref)

    assert out.shape == ref.shape, (out.shape, ref.shape)
    assert jnp.allclose(out, ref, atol=1e-4, rtol=1e-4), \
        f"max abs diff {jnp.max(jnp.abs(out - ref))}"

    print("KERNEL_OK")
</pallas_src>

<mosaic_0001>
module attributes {stable_mosaic.version = 11 : i64} {
  func.func @conv_oblong_kernel(%arg0: i32, %arg1: memref<1x10x20x4xf32, #tpu.memory_space<vmem>>, %arg2: memref<60x8xf32, #tpu.memory_space<vmem>>, %arg3: memref<1x8xf32, #tpu.memory_space<vmem>>, %arg4: memref<1x1x2x8xf32, #tpu.memory_space<vmem>>) attributes {dimension_semantics = [#tpu.dimension_semantics<parallel>], iteration_bounds = array<i64: 2>, scalar_prefetch = 0 : i64, scratch_operands = 0 : i64, tpu.core_type = #tpu.core_type<tc>, window_params = [{transform_indices = @transform_0, window_bounds = array<i64: 1, 10, 20, 4>}, {pipeline_mode = #tpu.pipeline_mode<synchronous>, transform_indices = @transform_1, window_bounds = array<i64: 60, 8>}, {pipeline_mode = #tpu.pipeline_mode<synchronous>, transform_indices = @transform_2, window_bounds = array<i64: 1, 8>}, {transform_indices = @transform_3, window_bounds = array<i64: 1, 1, 2, 8>}]} {
    %c0 = arith.constant 0 : index
    %c0_0 = arith.constant 0 : index
    %c0_1 = arith.constant 0 : index
    %c0_2 = arith.constant 0 : index
    %0 = vector.load %arg1[%c0, %c0_0, %c0_1, %c0_2] : memref<1x10x20x4xf32, #tpu.memory_space<vmem>>, vector<1x8x16x4xf32>
    %1 = vector.shape_cast %0 : vector<1x8x16x4xf32> to vector<128x4xf32>
    %c0_3 = arith.constant 0 : index
    %c0_4 = arith.constant 0 : index
    %c1 = arith.constant 1 : index
    %c0_5 = arith.constant 0 : index
    %2 = vector.load %arg1[%c0_3, %c0_4, %c1, %c0_5] : memref<1x10x20x4xf32, #tpu.memory_space<vmem>>, vector<1x8x16x4xf32>
    %3 = vector.shape_cast %2 : vector<1x8x16x4xf32> to vector<128x4xf32>
    %c0_6 = arith.constant 0 : index
    %c0_7 = arith.constant 0 : index
    %c2 = arith.constant 2 : index
    %c0_8 = arith.constant 0 : index
    %4 = vector.load %arg1[%c0_6, %c0_7, %c2, %c0_8] : memref<1x10x20x4xf32, #tpu.memory_space<vmem>>, vector<1x8x16x4xf32>
    %5 = vector.shape_cast %4 : vector<1x8x16x4xf32> to vector<128x4xf32>
    %c0_9 = arith.constant 0 : index
    %c0_10 = arith.constant 0 : index
    %c3 = arith.constant 3 : index
    %c0_11 = arith.constant 0 : index
    %6 = vector.load %arg1[%c0_9, %c0_10, %c3, %c0_11] : memref<1x10x20x4xf32, #tpu.memory_space<vmem>>, vector<1x8x16x4xf32>
    %7 = vector.shape_cast %6 : vector<1x8x16x4xf32> to vector<128x4xf32>
    %c0_12 = arith.constant 0 : index
    %c0_13 = arith.constant 0 : index
    %c4 = arith.constant 4 : index
    %c0_14 = arith.constant 0 : index
    %8 = vector.load %arg1[%c0_12, %c0_13, %c4, %c0_14] : memref<1x10x20x4xf32, #tpu.memory_space<vmem>>, vector<1x8x16x4xf32>
    %9 = vector.shape_cast %8 : vector<1x8x16x4xf32> to vector<128x4xf32>
    %c0_15 = arith.constant 0 : index
    %c1_16 = arith.constant 1 : index
    %c0_17 = arith.constant 0 : index
    %c0_18 = arith.constant 0 : index
    %10 = vector.load %arg1[%c0_15, %c1_16, %c0_17, %c0_18] : memref<1x10x20x4xf32, #tpu.memory_space<vmem>>, vector<1x8x16x4xf32>
    %11 = vector.shape_cast %10 : vector<1x8x16x4xf32> to vector<128x4xf32>
    %c0_19 = arith.constant 0 : index
    %c1_20 = arith.constant 1 : index
    %c1_21 = arith.constant 1 : index
    %c0_22 = arith.constant 0 : index
    %12 = vector.load %arg1[%c0_19, %c1_20, %c1_21, %c0_22] : memref<1x10x20x4xf32, #tpu.memory_space<vmem>>, vector<1x8x16x4xf32>
    %13 = vector.shape_cast %12 : vector<1x8x16x4xf32> to vector<128x4xf32>
    %c0_23 = arith.constant 0 : index
    %c1_24 = arith.constant 1 : index
    %c2_25 = arith.constant 2 : index
    %c0_26 = arith.constant 0 : index
    %14 = vector.load %arg1[%c0_23, %c1_24, %c2_25, %c0_26] : memref<1x10x20x4xf32, #tpu.memory_space<vmem>>, vector<1x8x16x4xf32>
    %15 = vector.shape_cast %14 : vector<1x8x16x4xf32> to vector<128x4xf32>
    %c0_27 = arith.constant 0 : index
    %c1_28 = arith.constant 1 : index
    %c3_29 = arith.constant 3 : index
    %c0_30 = arith.constant 0 : index
    %16 = vector.load %arg1[%c0_27, %c1_28, %c3_29, %c0_30] : memref<1x10x20x4xf32, #tpu.memory_space<vmem>>, vector<1x8x16x4xf32>
    %17 = vector.shape_cast %16 : vector<1x8x16x4xf32> to vector<128x4xf32>
    %c0_31 = arith.constant 0 : index
    %c1_32 = arith.constant 1 : index
    %c4_33 = arith.constant 4 : index
    %c0_34 = arith.constant 0 : index
    %18 = vector.load %arg1[%c0_31, %c1_32, %c4_33, %c0_34] : memref<1x10x20x4xf32, #tpu.memory_space<vmem>>, vector<1x8x16x4xf32>
    %19 = vector.shape_cast %18 : vector<1x8x16x4xf32> to vector<128x4xf32>
    %c0_35 = arith.constant 0 : index
    %c2_36 = arith.constant 2 : index
    %c0_37 = arith.constant 0 : index
    %c0_38 = arith.constant 0 : index
    %20 = vector.load %arg1[%c0_35, %c2_36, %c0_37, %c0_38] : memref<1x10x20x4xf32, #tpu.memory_space<vmem>>, vector<1x8x16x4xf32>
    %21 = vector.shape_cast %20 : vector<1x8x16x4xf32> to vector<128x4xf32>
    %c0_39 = arith.constant 0 : index
    %c2_40 = arith.constant 2 : index
    %c1_41 = arith.constant 1 : index
    %c0_42 = arith.constant 0 : index
    %22 = vector.load %arg1[%c0_39, %c2_40, %c1_41, %c0_42] : memref<1x10x20x4xf32, #tpu.memory_space<vmem>>, vector<1x8x16x4xf32>
    %23 = vector.shape_cast %22 : vector<1x8x16x4xf32> to vector<128x4xf32>
    %c0_43 = arith.constant 0 : index
    %c2_44 = arith.constant 2 : index
    %c2_45 = arith.constant 2 : index
    %c0_46 = arith.constant 0 : index
    %24 = vector.load %arg1[%c0_43, %c2_44, %c2_45, %c0_46] : memref<1x10x20x4xf32, #tpu.memory_space<vmem>>, vector<1x8x16x4xf32>
    %25 = vector.shape_cast %24 : vector<1x8x16x4xf32> to vector<128x4xf32>
    %c0_47 = arith.constant 0 : index
    %c2_48 = arith.constant 2 : index
    %c3_49 = arith.constant 3 : index
    %c0_50 = arith.constant 0 : index
    %26 = vector.load %arg1[%c0_47, %c2_48, %c3_49, %c0_50] : memref<1x10x20x4xf32, #tpu.memory_space<vmem>>, vector<1x8x16x4xf32>
    %27 = vector.shape_cast %26 : vector<1x8x16x4xf32> to vector<128x4xf32>
    %c0_51 = arith.constant 0 : index
    %c2_52 = arith.constant 2 : index
    %c4_53 = arith.constant 4 : index
    %c0_54 = arith.constant 0 : index
    %28 = vector.load %arg1[%c0_51, %c2_52, %c4_53, %c0_54] : memref<1x10x20x4xf32, #tpu.memory_space<vmem>>, vector<1x8x16x4xf32>
    %29 = vector.shape_cast %28 : vector<1x8x16x4xf32> to vector<128x4xf32>
    %30 = tpu.concatenate %1, %3, %5, %7, %9, %11, %13, %15, %17, %19, %21, %23, %25, %27, %29 in 1 : vector<128x4xf32>, vector<128x4xf32>, vector<128x4xf32>, vector<128x4xf32>, vector<128x4xf32>, vector<128x4xf32>, vector<128x4xf32>, vector<128x4xf32>, vector<128x4xf32>, vector<128x4xf32>, vector<128x4xf32>, vector<128x4xf32>, vector<128x4xf32>, vector<128x4xf32>, vector<128x4xf32> -> vector<128x60xf32>
    %c0_55 = arith.constant 0 : index
    %c0_56 = arith.constant 0 : index
    %31 = vector.load %arg2[%c0_55, %c0_56] : memref<60x8xf32, #tpu.memory_space<vmem>>, vector<60x8xf32>
    %cst = arith.constant dense<0.000000e+00> : vector<128x8xf32>
    %32 = tpu.matmul %30, %31, %cst {dimension_numbers = #tpu.dot_dimension_numbers<[1], [0], [0], [1], [0, 0, 1, 1], [], []>} : vector<128x60xf32>, vector<60x8xf32>, vector<128x8xf32> -> vector<128x8xf32>
    %c0_57 = arith.constant 0 : index
    %c0_58 = arith.constant 0 : index
    %33 = vector.load %arg3[%c0_57, %c0_58] : memref<1x8xf32, #tpu.memory_space<vmem>>, vector<1x8xf32>
    %34 = vector.broadcast %33 : vector<1x8xf32> to vector<128x8xf32>
    %35 = arith.addf %32, %34 : vector<128x8xf32>
    %cst_59 = arith.constant 0.000000e+00 : f32
    %36 = vector.broadcast %cst_59 : f32 to vector<128x8xf32>
    %37 = arith.maximumf %35, %36 : vector<128x8xf32>
    %38 = vector.shape_cast %37 : vector<128x8xf32> to vector<1x1x8x16x8xf32>
    %39 = vector.extract_strided_slice %38 {offsets = [0, 0, 0, 0, 0], sizes = [1, 1, 1, 16, 8], strides = [1, 1, 1, 1, 1]} : vector<1x1x8x16x8xf32> to vector<1x1x1x16x8xf32>
    %40 = vector.shape_cast %39 : vector<1x1x1x16x8xf32> to vector<1x1x16x8xf32>
    %41 = vector.extract_strided_slice %38 {offsets = [0, 0, 1, 0, 0], sizes = [1, 1, 1, 16, 8], strides = [1, 1, 1, 1, 1]} : vector<1x1x8x16x8xf32> to vector<1x1x1x16x8xf32>
    %42 = vector.shape_cast %41 : vector<1x1x1x16x8xf32> to vector<1x1x16x8xf32>
    %43 = arith.maximumf %40, %42 : vector<1x1x16x8xf32>
    %44 = vector.extract_strided_slice %38 {offsets = [0, 0, 2, 0, 0], sizes = [1, 1, 1, 16, 8], strides = [1, 1, 1, 1, 1]} : vector<1x1x8x16x8xf32> to vector<1x1x1x16x8xf32>
    %45 = vector.shape_cast %44 : vector<1x1x1x16x8xf32> to vector<1x1x16x8xf32>
    %46 = arith.maximumf %43, %45 : vector<1x1x16x8xf32>
    %47 = vector.extract_strided_slice %38 {offsets = [0, 0, 3, 0, 0], sizes = [1, 1, 1, 16, 8], strides = [1, 1, 1, 1, 1]} : vector<1x1x8x16x8xf32> to vector<1x1x1x16x8xf32>
    %48 = vector.shape_cast %47 : vector<1x1x1x16x8xf32> to vector<1x1x16x8xf32>
    %49 = arith.maximumf %46, %48 : vector<1x1x16x8xf32>
    %50 = vector.extract_strided_slice %38 {offsets = [0, 0, 4, 0, 0], sizes = [1, 1, 1, 16, 8], strides = [1, 1, 1, 1, 1]} : vector<1x1x8x16x8xf32> to vector<1x1x1x16x8xf32>
    %51 = vector.shape_cast %50 : vector<1x1x1x16x8xf32> to vector<1x1x16x8xf32>
    %52 = arith.maximumf %49, %51 : vector<1x1x16x8xf32>
    %53 = vector.extract_strided_slice %38 {offsets = [0, 0, 5, 0, 0], sizes = [1, 1, 1, 16, 8], strides = [1, 1, 1, 1, 1]} : vector<1x1x8x16x8xf32> to vector<1x1x1x16x8xf32>
    %54 = vector.shape_cast %53 : vector<1x1x1x16x8xf32> to vector<1x1x16x8xf32>
    %55 = arith.maximumf %52, %54 : vector<1x1x16x8xf32>
    %56 = vector.extract_strided_slice %38 {offsets = [0, 0, 6, 0, 0], sizes = [1, 1, 1, 16, 8], strides = [1, 1, 1, 1, 1]} : vector<1x1x8x16x8xf32> to vector<1x1x1x16x8xf32>
    %57 = vector.shape_cast %56 : vector<1x1x1x16x8xf32> to vector<1x1x16x8xf32>
    %58 = arith.maximumf %55, %57 : vector<1x1x16x8xf32>
    %59 = vector.extract_strided_slice %38 {offsets = [0, 0, 7, 0, 0], sizes = [1, 1, 1, 16, 8], strides = [1, 1, 1, 1, 1]} : vector<1x1x8x16x8xf32> to vector<1x1x1x16x8xf32>
    %60 = vector.shape_cast %59 : vector<1x1x1x16x8xf32> to vector<1x1x16x8xf32>
    %61 = arith.maximumf %58, %60 : vector<1x1x16x8xf32>
    %62 = vector.shape_cast %61 : vector<1x1x16x8xf32> to vector<1x1x2x8x8xf32>
    %63 = vector.extract_strided_slice %62 {offsets = [0, 0, 0, 0, 0], sizes = [1, 1, 2, 1, 8], strides = [1, 1, 1, 1, 1]} : vector<1x1x2x8x8xf32> to vector<1x1x2x1x8xf32>
    %64 = vector.shape_cast %63 : vector<1x1x2x1x8xf32> to vector<1x1x2x8xf32>
    %65 = vector.extract_strided_slice %62 {offsets = [0, 0, 0, 1, 0], sizes = [1, 1, 2, 1, 8], strides = [1, 1, 1, 1, 1]} : vector<1x1x2x8x8xf32> to vector<1x1x2x1x8xf32>
    %66 = vector.shape_cast %65 : vector<1x1x2x1x8xf32> to vector<1x1x2x8xf32>
    %67 = arith.maximumf %64, %66 : vector<1x1x2x8xf32>
    %68 = vector.extract_strided_slice %62 {offsets = [0, 0, 0, 2, 0], sizes = [1, 1, 2, 1, 8], strides = [1, 1, 1, 1, 1]} : vector<1x1x2x8x8xf32> to vector<1x1x2x1x8xf32>
    %69 = vector.shape_cast %68 : vector<1x1x2x1x8xf32> to vector<1x1x2x8xf32>
    %70 = arith.maximumf %67, %69 : vector<1x1x2x8xf32>
    %71 = vector.extract_strided_slice %62 {offsets = [0, 0, 0, 3, 0], sizes = [1, 1, 2, 1, 8], strides = [1, 1, 1, 1, 1]} : vector<1x1x2x8x8xf32> to vector<1x1x2x1x8xf32>
    %72 = vector.shape_cast %71 : vector<1x1x2x1x8xf32> to vector<1x1x2x8xf32>
    %73 = arith.maximumf %70, %72 : vector<1x1x2x8xf32>
    %74 = vector.extract_strided_slice %62 {offsets = [0, 0, 0, 4, 0], sizes = [1, 1, 2, 1, 8], strides = [1, 1, 1, 1, 1]} : vector<1x1x2x8x8xf32> to vector<1x1x2x1x8xf32>
    %75 = vector.shape_cast %74 : vector<1x1x2x1x8xf32> to vector<1x1x2x8xf32>
    %76 = arith.maximumf %73, %75 : vector<1x1x2x8xf32>
    %77 = vector.extract_strided_slice %62 {offsets = [0, 0, 0, 5, 0], sizes = [1, 1, 2, 1, 8], strides = [1, 1, 1, 1, 1]} : vector<1x1x2x8x8xf32> to vector<1x1x2x1x8xf32>
    %78 = vector.shape_cast %77 : vector<1x1x2x1x8xf32> to vector<1x1x2x8xf32>
    %79 = arith.maximumf %76, %78 : vector<1x1x2x8xf32>
    %80 = vector.extract_strided_slice %62 {offsets = [0, 0, 0, 6, 0], sizes = [1, 1, 2, 1, 8], strides = [1, 1, 1, 1, 1]} : vector<1x1x2x8x8xf32> to vector<1x1x2x1x8xf32>
    %81 = vector.shape_cast %80 : vector<1x1x2x1x8xf32> to vector<1x1x2x8xf32>
    %82 = arith.maximumf %79, %81 : vector<1x1x2x8xf32>
    %83 = vector.extract_strided_slice %62 {offsets = [0, 0, 0, 7, 0], sizes = [1, 1, 2, 1, 8], strides = [1, 1, 1, 1, 1]} : vector<1x1x2x8x8xf32> to vector<1x1x2x1x8xf32>
    %84 = vector.shape_cast %83 : vector<1x1x2x1x8xf32> to vector<1x1x2x8xf32>
    %85 = arith.maximumf %82, %84 : vector<1x1x2x8xf32>
    %c0_60 = arith.constant 0 : index
    %c0_61 = arith.constant 0 : index
    %c0_62 = arith.constant 0 : index
    %c0_63 = arith.constant 0 : index
    %86 = vector.load %arg4[%c0_60, %c0_61, %c0_62, %c0_63] : memref<1x1x2x8xf32, #tpu.memory_space<vmem>>, vector<1x1x2x8xf32>
    tpu.vector_store %arg4[%c0_60, %c0_61, %c0_62, %c0_63], %85 {strides = array<i32>} : memref<1x1x2x8xf32, #tpu.memory_space<vmem>>, vector<1x1x2x8xf32>,
    return
  }
  func.func @transform_0(%arg0: i32) -> (i32, i32, i32, i32) {
    %c0_i32 = arith.constant 0 : i32
    %c0_i32_0 = arith.constant 0 : i32
    %c0_i32_1 = arith.constant 0 : i32
    %c0_i32_2 = arith.constant 0 : i32
    return %arg0, %c0_i32, %c0_i32_0, %c0_i32_1 : i32, i32, i32, i32
  }
  func.func @transform_1(%arg0: i32) -> (i32, i32) {
    %c0_i32 = arith.constant 0 : i32
    %c0_i32_0 = arith.constant 0 : i32
    %c0_i32_1 = arith.constant 0 : i32
    return %c0_i32, %c0_i32_0 : i32, i32
  }
  func.func @transform_2(%arg0: i32) -> (i32, i32) {
    %c0_i32 = arith.constant 0 : i32
    %c0_i32_0 = arith.constant 0 : i32
    %c0_i32_1 = arith.constant 0 : i32
    return %c0_i32, %c0_i32_0 : i32, i32
  }
  func.func @transform_3(%arg0: i32) -> (i32, i32, i32, i32) {
    %c0_i32 = arith.constant 0 : i32
    %c0_i32_0 = arith.constant 0 : i32
    %c0_i32_1 = arith.constant 0 : i32
    %c0_i32_2 = arith.constant 0 : i32
    return %arg0, %c0_i32, %c0_i32_0, %c0_i32_1 : i32, i32, i32, i32
  }
}

</mosaic_0001>

<llo_original>
// kernel: tpu_custom_call.1
$region0: #{tpu_custom_call.1}
  #allocation0 [shape = 'u32[]', space=smem, size = 0x4, offset = 0x4, fixed_abs, tag = 'smem constant byte address 0x4 - core index']
  #allocation1 [shape = 'u32[144,128]{1,0:T(1,128)}', space=vmem, size = 0x12000, scoped, tag = 'internal scratch']
  %s0 = inlined_call_operand.vmem [shape: f32[2,10,20,4], index: 0, kind: input, shape index: {}]
  %s1 = inlined_call_operand.vmem [shape: f32[60,8], index: 1, kind: input, shape index: {}]
  %s2 = inlined_call_operand.vmem [shape: f32[1,8], index: 2, kind: input, shape index: {}]
  %s3 = inlined_call_operand.hbm [shape: f32[2,1,2,8], index: 3, kind: output, shape index: {}]
  %s4 = sld [smem:[#allocation0]]
  $region45: #{tpu_custom_call.1} parent=0
    _
  %s6 = ssub.s32 1, %s4
  %s7 = scalar_select 0, %s6, %s4
  $region1: #{tpu_custom_call.1} parent=0
    #allocation2 [shape = 'u8[2048]{0}', space=vmem, size = 0x800, scoped, tag = 'output window, operand 0']
    #allocation3 [shape = 's32[2]{0}', space=sflag, size = 0x8, scoped, tag = 'scoped memory for tpu_custom_call.1']
    %8 = vsyncpa [#allocation3], 0
    %s9 = scalar_lea.sflag [#allocation3], 1
    %10 = vsyncpa %s9, 0
    loop: start=0, step=1, limit=4
    $region2: #{tpu_custom_call.1} parent=1 // loop_pre_header
      _
    $region3: #{tpu_custom_call.1} parent=1 // loop_header
      %s12 = sphi 0, %s16
      %p13 = scmp.ge.s32.totalorder %s12, 4
      %s22 = sphi 0, %s24
      %s25 = sphi 0, %s22
      %s26 = sphi 0, %s25
      %s42 = sphi 0, %s26
      %s46 = sphi 0, %s46
      %s48 = sphi 0, %s46
      %s49 = sphi 0, %s48
      %s63 = sphi 0, %s49
      %s67 = sphi 0, %s67
      %s69 = sphi 0, %s67
      %s70 = sphi 0, %s69
      %s84 = sphi 0, %s70
      %s90 = sphi 0, %s92
      %s93 = sphi 0, %s90
      %s94 = sphi 0, %s93
      %s110 = sphi 0, %s94
    $region4: #{tpu_custom_call.1} parent=1 // loop_header_branch
      %15 = sbr.rel (%p13) target = $region8
    $region5: #{tpu_custom_call.1} parent=1 // loop_body
      %s17 = ssub.s32 %s12, 1
      %s18 = ssub.s32 %s12, 2
      %s19 = sadd.s32 %s12, 1
      %s20 = ssub.s32 %s12, %s19
      %p21 = scmp.eq.s32.totalorder %s20, 0
      %s23 = sadd.s32 %s22, 1
      %s24 = scalar_select %p21, %s22, %s23
      %p27 = pneg %p21
      %p28 = scmp.eq.s32.totalorder %s12, 1
      %p29 = por %p27, %p28
      %p30 = scmp.ne.s32.totalorder %s22, %s25
      %p31 = scmp.eq.s32.totalorder %s12, 0
      %p32 = por %p30, %p31
      %p33 = scmp.ne.s32.totalorder %s22, %s25
      %p34 = scmp.eq.s32.totalorder %s17, 1
      %p35 = por %p33, %p34
      %p36 = scmp.ne.s32.totalorder %s25, %s26
      %p37 = scmp.eq.s32.totalorder %s17, 0
      %p38 = por %p36, %p37
      %p39 = scmp.ne.s32.totalorder %s25, %s26
      %p40 = scmp.eq.s32.totalorder %s18, 1
      %p41 = por %p39, %p40
      %p43 = scmp.ne.s32.totalorder %s26, %s42
      %p44 = scmp.eq.s32.totalorder %s18, 0
      %p45 = por %p43, %p44
      %s47 = sadd.s32 %s46, 1
      %p50 = scmp.eq.s32.totalorder %s12, 1
      %p51 = scmp.ne.s32.totalorder %s46, %s48
      %p52 = scmp.eq.s32.totalorder %s12, 0
      %p53 = por %p51, %p52
      %p54 = scmp.ne.s32.totalorder %s46, %s48
      %p55 = scmp.eq.s32.totalorder %s17, 1
      %p56 = por %p54, %p55
      %p57 = scmp.ne.s32.totalorder %s48, %s49
      %p58 = scmp.eq.s32.totalorder %s17, 0
      %p59 = por %p57, %p58
      %p60 = scmp.ne.s32.totalorder %s48, %s49
      %p61 = scmp.eq.s32.totalorder %s18, 1
      %p62 = por %p60, %p61
      %p64 = scmp.ne.s32.totalorder %s49, %s63
      %p65 = scmp.eq.s32.totalorder %s18, 0
      %p66 = por %p64, %p65
      %s68 = sadd.s32 %s67, 1
      %p71 = scmp.eq.s32.totalorder %s12, 1
      %p72 = scmp.ne.s32.totalorder %s67, %s69
      %p73 = scmp.eq.s32.totalorder %s12, 0
      %p74 = por %p72, %p73
      %p75 = scmp.ne.s32.totalorder %s67, %s69
      %p76 = scmp.eq.s32.totalorder %s17, 1
      %p77 = por %p75, %p76
      %p78 = scmp.ne.s32.totalorder %s69, %s70
      %p79 = scmp.eq.s32.totalorder %s17, 0
      %p80 = por %p78, %p79
      %p81 = scmp.ne.s32.totalorder %s69, %s70
      %p82 = scmp.eq.s32.totalorder %s18, 1
      %p83 = por %p81, %p82
      %p85 = scmp.ne.s32.totalorder %s70, %s84
      %p86 = scmp.eq.s32.totalorder %s18, 0
      %p87 = por %p85, %p86
      %s88 = ssub.s32 %s12, %s19
      %p89 = scmp.eq.s32.totalorder %s88, 0
      %s91 = sadd.s32 %s90, 1
      %s92 = scalar_select %p89, %s90, %s91
      %p95 = pneg %p89
      %p96 = scmp.eq.s32.totalorder %s12, 1
      %p97 = por %p95, %p96
      %p98 = scmp.ne.s32.totalorder %s90, %s93
      %p99 = scmp.eq.s32.totalorder %s12, 0
      %p100 = por %p98, %p99
      %p101 = scmp.ne.s32.totalorder %s90, %s93
      %p102 = scmp.eq.s32.totalorder %s17, 1
      %p103 = por %p101, %p102
      %p104 = scmp.ne.s32.totalorder %s93, %s94
      %p105 = scmp.eq.s32.totalorder %s17, 0
      %p106 = por %p104, %p105
      %p107 = scmp.ne.s32.totalorder %s93, %s94
      %p108 = scmp.eq.s32.totalorder %s18, 1
      %p109 = por %p107, %p108
      %p111 = scmp.ne.s32.totalorder %s94, %s110
      %p112 = scmp.eq.s32.totalorder %s18, 0
      %p113 = por %p111, %p112
      %p114 = scmp.le.s32.totalorder 1, %s12
      %p115 = scmp.lt.s32.totalorder %s12, 3
      %p116 = pnand %p114, %p115
      %p117 = pneg %p116
      // Predicated region
      $region9: #{tpu_custom_call.1} parent=5 // pred_check
        _
      $region10: #{tpu_custom_call.1} parent=5 // pred_check_branch
        %119 = sbr.rel (%p116) target = $region12
      $region11: #{tpu_custom_call.1} parent=5 // pred_region
        %s120 = ssub.s32 %s12, 1
        // Predicated region
        $region13: #{tpu_custom_call.1} parent=11 // pred_check
          %p121 = pneg %p59
        $region14: #{tpu_custom_call.1} parent=11 // pred_check_branch
          %123 = sbr.rel (%p121) target = $region16
        $region15: #{tpu_custom_call.1} parent=11 // pred_region
          _
        $region16: #{tpu_custom_call.1} parent=11 // pred_fallthru
          _
        // Predicated region
        $region17: #{tpu_custom_call.1} parent=11 // pred_check
          %p124 = pneg %p80
        $region18: #{tpu_custom_call.1} parent=11 // pred_check_branch
          %126 = sbr.rel (%p124) target = $region20
        $region19: #{tpu_custom_call.1} parent=11 // pred_region
          _
        $region20: #{tpu_custom_call.1} parent=11 // pred_fallthru
          _
      $region12: #{tpu_custom_call.1} parent=5 // pred_fallthru
        _
      %p127 = scmp.lt.s32.totalorder %s12, 2
      // Predicated region
      $region21: #{tpu_custom_call.1} parent=5 // pred_check
        %p128 = pneg %p127
      $region22: #{tpu_custom_call.1} parent=5 // pred_check_branch
        %130 = sbr.rel (%p128) target = $region24
      $region23: #{tpu_custom_call.1} parent=5 // pred_region
        // Predicated region
        $region25: #{tpu_custom_call.1} parent=23 // pred_check
          %p131 = pneg %p32
        $region26: #{tpu_custom_call.1} parent=23 // pred_check_branch
          %133 = sbr.rel (%p131) target = $region28
        $region27: #{tpu_custom_call.1} parent=23 // pred_region
          %p134 = scmp.lt.s32.totalorder %s12, 1
          %s135 = scalar_select %p134, %s12, 1
          %s136 = smul.addr %s135, 30
          %s137 = smul.addr %s136, 8
          %s138 = scalar_lea.vmem %s0, %s137
        $region28: #{tpu_custom_call.1} parent=23 // pred_fallthru
          _
      $region24: #{tpu_custom_call.1} parent=5 // pred_fallthru
        _
      %p139 = scmp.le.s32.totalorder 1, %s12
      %p140 = scmp.lt.s32.totalorder %s12, 3
      %p141 = pnand %p139, %p140
      %p142 = pneg %p141
      // Predicated region
      $region29: #{tpu_custom_call.1} parent=5 // pred_check
        _
      $region30: #{tpu_custom_call.1} parent=5 // pred_check_branch
        %144 = sbr.rel (%p141) target = $region32
      $region31: #{tpu_custom_call.1} parent=5 // pred_region
        %s145 = ssub.s32 %s12, 1
        %p146 = scmp.lt.s32.totalorder %s17, 1
        %s147 = scalar_select %p146, %s17, 1
        %s148 = smul.addr %s147, 30
        %s149 = smul.addr %s148, 8
        %s150 = scalar_lea.vmem %s0, %s149
        %p151 = pneg %p38
        %p152 = pneg %p35
        %p153 = pneg %p59
        %p154 = pneg %p56
        %p155 = pneg %p80
        %p156 = pneg %p77
        %p157 = pneg %p106
        %p158 = pneg %p103
        %s159 = sand.u32 %s93, 1
        %s160 = scalar_lea.sflag [#allocation3], %s159
        %s161 = sand.u32 %s93, 1
        %s162 = smul.addr %s161, 2
        %s163 = scalar_lea.vmem [#allocation2], %s162
        %p164 = scmp.lt.s32.totalorder %s17, 1
        %s165 = scalar_select %p164, %s17, 1
        %s166 = smul.addr %s165, 30
        %s167 = smul.addr %s166, 8
        %s168 = scalar_lea.vmem %s0, %s167
        %v169 = vld [vmem:[%s168] sm:$0xff]
        %v170 = vld [vmem:[%s168 + $0x8] sm:$0xff]
        %v171 = vld [vmem:[%s168 + $0x18] sm:$0xff]
        %v172 = vld [vmem:[%s168 + $0x20] sm:$0xff]
        %v173 = vld [vmem:[%s168 + $0x30] sm:$0xff]
        %v174 = vld [vmem:[%s168 + $0x38] sm:$0xff]
        %v175 = vld [vmem:[%s168 + $0x48] sm:$0xff]
        %v176 = vld [vmem:[%s168 + $0x50] sm:$0xff]
        %v177 = vld [vmem:[%s168 + $0x60] sm:$0xff]
        %v178 = vld [vmem:[%s168 + $0x68] sm:$0xff]
        %v179 = vld [vmem:[%s168 + $0x78] sm:$0xff]
        %v180 = vld [vmem:[%s168 + $0x80] sm:$0xff]
        %v181 = vld [vmem:[%s168 + $0x90] sm:$0xff]
        %v182 = vld [vmem:[%s168 + $0x98] sm:$0xff]
        %v183 = vld [vmem:[%s168 + $0xa8] sm:$0xff]
        %v184 = vld [vmem:[%s168 + $0xb0] sm:$0xff]
        %v185 = vld [vmem:[%s168 + $0x1] sm:$0xff]
        %v186 = vld [vmem:[%s168 + $0x9] sm:$0xff]
        %v187 = vld [vmem:[%s168 + $0x19] sm:$0xff]
        %v188 = vld [vmem:[%s168 + $0x21] sm:$0xff]
        %v189 = vld [vmem:[%s168 + $0x31] sm:$0xff]
        %v190 = vld [vmem:[%s168 + $0x39] sm:$0xff]
        %v191 = vld [vmem:[%s168 + $0x49] sm:$0xff]
        %v192 = vld [vmem:[%s168 + $0x51] sm:$0xff]
        %v193 = vld [vmem:[%s168 + $0x61] sm:$0xff]
        %v194 = vld [vmem:[%s168 + $0x69] sm:$0xff]
        %v195 = vld [vmem:[%s168 + $0x79] sm:$0xff]
        %v196 = vld [vmem:[%s168 + $0x81] sm:$0xff]
        %v197 = vld [vmem:[%s168 + $0x91] sm:$0xff]
        %v198 = vld [vmem:[%s168 + $0x99] sm:$0xff]
        %v199 = vld [vmem:[%s168 + $0xa9] sm:$0xff]
        %v200 = vld [vmem:[%s168 + $0xb1] sm:$0xff]
        %v201 = vld [vmem:[%s168 + $0x2] sm:$0xff]
        %v202 = vld [vmem:[%s168 + $0xa] sm:$0xff]
        %v203 = vld [vmem:[%s168 + $0x1a] sm:$0xff]
        %v204 = vld [vmem:[%s168 + $0x22] sm:$0xff]
        %v205 = vld [vmem:[%s168 + $0x32] sm:$0xff]
        %v206 = vld [vmem:[%s168 + $0x3a] sm:$0xff]
        %v207 = vld [vmem:[%s168 + $0x4a] sm:$0xff]
        %v208 = vld [vmem:[%s168 + $0x52] sm:$0xff]
        %v209 = vld [vmem:[%s168 + $0x62] sm:$0xff]
        %v210 = vld [vmem:[%s168 + $0x6a] sm:$0xff]
        %v211 = vld [vmem:[%s168 + $0x7a] sm:$0xff]
        %v212 = vld [vmem:[%s168 + $0x82] sm:$0xff]
        %v213 = vld [vmem:[%s168 + $0x92] sm:$0xff]
        %v214 = vld [vmem:[%s168 + $0x9a] sm:$0xff]
        %v215 = vld [vmem:[%s168 + $0xaa] sm:$0xff]
        %v216 = vld [vmem:[%s168 + $0xb2] sm:$0xff]
        %v217 = vld [vmem:[%s168 + $0x3] sm:$0xff]
        %v218 = vld [vmem:[%s168 + $0xb] sm:$0xff]
        %v219 = vld [vmem:[%s168 + $0x1b] sm:$0xff]
        %v220 = vld [vmem:[%s168 + $0x23] sm:$0xff]
        %v221 = vld [vmem:[%s168 + $0x33] sm:$0xff]
        %v222 = vld [vmem:[%s168 + $0x3b] sm:$0xff]
        %v223 = vld [vmem:[%s168 + $0x4b] sm:$0xff]
        %v224 = vld [vmem:[%s168 + $0x53] sm:$0xff]
        %v225 = vld [vmem:[%s168 + $0x63] sm:$0xff]
        %v226 = vld [vmem:[%s168 + $0x6b] sm:$0xff]
        %v227 = vld [vmem:[%s168 + $0x7b] sm:$0xff]
        %v228 = vld [vmem:[%s168 + $0x83] sm:$0xff]
        %v229 = vld [vmem:[%s168 + $0x93] sm:$0xff]
        %v230 = vld [vmem:[%s168 + $0x9b] sm:$0xff]
        %v231 = vld [vmem:[%s168 + $0xab] sm:$0xff]
        %v232 = vld [vmem:[%s168 + $0xb3] sm:$0xff]
        %v233 = vld [vmem:[%s168 + $0x4] sm:$0xff]
        %v234 = vld [vmem:[%s168 + $0xc] sm:$0xff]
        %v235 = vld [vmem:[%s168 + $0x1c] sm:$0xff]
        %v236 = vld [vmem:[%s168 + $0x24] sm:$0xff]
        %v237 = vld [vmem:[%s168 + $0x34] sm:$0xff]
        %v238 = vld [vmem:[%s168 + $0x3c] sm:$0xff]
        %v239 = vld [vmem:[%s168 + $0x4c] sm:$0xff]
        %v240 = vld [vmem:[%s168 + $0x54] sm:$0xff]
        %v241 = vld [vmem:[%s168 + $0x64] sm:$0xff]
        %v242 = vld [vmem:[%s168 + $0x6c] sm:$0xff]
        %v243 = vld [vmem:[%s168 + $0x7c] sm:$0xff]
        %v244 = vld [vmem:[%s168 + $0x84] sm:$0xff]
        %v245 = vld [vmem:[%s168 + $0x94] sm:$0xff]
        %v246 = vld [vmem:[%s168 + $0x9c] sm:$0xff]
        %v247 = vld [vmem:[%s168 + $0xac] sm:$0xff]
        %v248 = vld [vmem:[%s168 + $0xb4] sm:$0xff]
        %s249 = scalar_lea.vmem %s168, 24
        %v250 = vld [vmem:[%s249] sm:$0xff]
        %v251 = vld [vmem:[%s249 + $0x8] sm:$0xff]
        %v252 = vld [vmem:[%s249 + $0x18] sm:$0xff]
        %v253 = vld [vmem:[%s249 + $0x20] sm:$0xff]
        %v254 = vld [vmem:[%s249 + $0x30] sm:$0xff]
        %v255 = vld [vmem:[%s249 + $0x38] sm:$0xff]
        %v256 = vld [vmem:[%s249 + $0x48] sm:$0xff]
        %v257 = vld [vmem:[%s249 + $0x50] sm:$0xff]
        %v258 = vld [vmem:[%s249 + $0x60] sm:$0xff]
        %v259 = vld [vmem:[%s249 + $0x68] sm:$0xff]
        %v260 = vld [vmem:[%s249 + $0x78] sm:$0xff]
        %v261 = vld [vmem:[%s249 + $0x80] sm:$0xff]
        %v262 = vld [vmem:[%s249 + $0x90] sm:$0xff]
        %v263 = vld [vmem:[%s249 + $0x98] sm:$0xff]
        %v264 = vld [vmem:[%s249 + $0xa8] sm:$0xff]
        %v265 = vld [vmem:[%s249 + $0xb0] sm:$0xff]
        %v266 = vld [vmem:[%s249 + $0x1] sm:$0xff]
        %v267 = vld [vmem:[%s249 + $0x9] sm:$0xff]
        %v268 = vld [vmem:[%s249 + $0x19] sm:$0xff]
        %v269 = vld [vmem:[%s249 + $0x21] sm:$0xff]
        %v270 = vld [vmem:[%s249 + $0x31] sm:$0xff]
        %v271 = vld [vmem:[%s249 + $0x39] sm:$0xff]
        %v272 = vld [vmem:[%s249 + $0x49] sm:$0xff]
        %v273 = vld [vmem:[%s249 + $0x51] sm:$0xff]
        %v274 = vld [vmem:[%s249 + $0x61] sm:$0xff]
        %v275 = vld [vmem:[%s249 + $0x69] sm:$0xff]
        %v276 = vld [vmem:[%s249 + $0x79] sm:$0xff]
        %v277 = vld [vmem:[%s249 + $0x81] sm:$0xff]
        %v278 = vld [vmem:[%s249 + $0x91] sm:$0xff]
        %v279 = vld [vmem:[%s249 + $0x99] sm:$0xff]
        %v280 = vld [vmem:[%s249 + $0xa9] sm:$0xff]
        %v281 = vld [vmem:[%s249 + $0xb1] sm:$0xff]
        %v282 = vld [vmem:[%s249 + $0x2] sm:$0xff]
        %v283 = vld [vmem:[%s249 + $0xa] sm:$0xff]
        %v284 = vld [vmem:[%s249 + $0x1a] sm:$0xff]
        %v285 = vld [vmem:[%s249 + $0x22] sm:$0xff]
        %v286 = vld [vmem:[%s249 + $0x32] sm:$0xff]
        %v287 = vld [vmem:[%s249 + $0x3a] sm:$0xff]
        %v288 = vld [vmem:[%s249 + $0x4a] sm:$0xff]
        %v289 = vld [vmem:[%s249 + $0x52] sm:$0xff]
        %v290 = vld [vmem:[%s249 + $0x62] sm:$0xff]
        %v291 = vld [vmem:[%s249 + $0x6a] sm:$0xff]
        %v292 = vld [vmem:[%s249 + $0x7a] sm:$0xff]
        %v293 = vld [vmem:[%s249 + $0x82] sm:$0xff]
        %v294 = vld [vmem:[%s249 + $0x92] sm:$0xff]
        %v295 = vld [vmem:[%s249 + $0x9a] sm:$0xff]
        %v296 = vld [vmem:[%s249 + $0xaa] sm:$0xff]
        %v297 = vld [vmem:[%s249 + $0xb2] sm:$0xff]
        %v298 = vld [vmem:[%s249 + $0x3] sm:$0xff]
        %v299 = vld [vmem:[%s249 + $0xb] sm:$0xff]
        %v300 = vld [vmem:[%s249 + $0x1b] sm:$0xff]
        %v301 = vld [vmem:[%s249 + $0x23] sm:$0xff]
        %v302 = vld [vmem:[%s249 + $0x33] sm:$0xff]
        %v303 = vld [vmem:[%s249 + $0x3b] sm:$0xff]
        %v304 = vld [vmem:[%s249 + $0x4b] sm:$0xff]
        %v305 = vld [vmem:[%s249 + $0x53] sm:$0xff]
        %v306 = vld [vmem:[%s249 + $0x63] sm:$0xff]
        %v307 = vld [vmem:[%s249 + $0x6b] sm:$0xff]
        %v308 = vld [vmem:[%s249 + $0x7b] sm:$0xff]
        %v309 = vld [vmem:[%s249 + $0x83] sm:$0xff]
        %v310 = vld [vmem:[%s249 + $0x93] sm:$0xff]
        %v311 = vld [vmem:[%s249 + $0x9b] sm:$0xff]
        %v312 = vld [vmem:[%s249 + $0xab] sm:$0xff]
        %v313 = vld [vmem:[%s249 + $0xb3] sm:$0xff]
        %v314 = vld [vmem:[%s249 + $0x4] sm:$0xff]
        %v315 = vld [vmem:[%s249 + $0xc] sm:$0xff]
        %v316 = vld [vmem:[%s249 + $0x1c] sm:$0xff]
        %v317 = vld [vmem:[%s249 + $0x24] sm:$0xff]
        %v318 = vld [vmem:[%s249 + $0x34] sm:$0xff]
        %v319 = vld [vmem:[%s249 + $0x3c] sm:$0xff]
        %v320 = vld [vmem:[%s249 + $0x4c] sm:$0xff]
        %v321 = vld [vmem:[%s249 + $0x54] sm:$0xff]
        %v322 = vld [vmem:[%s249 + $0x64] sm:$0xff]
        %v323 = vld [vmem:[%s249 + $0x6c] sm:$0xff]
        %v324 = vld [vmem:[%s249 + $0x7c] sm:$0xff]
        %v325 = vld [vmem:[%s249 + $0x84] sm:$0xff]
        %v326 = vld [vmem:[%s249 + $0x94] sm:$0xff]
        %v327 = vld [vmem:[%s249 + $0x9c] sm:$0xff]
        %v328 = vld [vmem:[%s249 + $0xac] sm:$0xff]
        %v329 = vld [vmem:[%s249 + $0xb4] sm:$0xff]
        %s330 = scalar_lea.vmem %s168, 48
        %v331 = vld [vmem:[%s330] sm:$0xff]
        %v332 = vld [vmem:[%s330 + $0x8] sm:$0xff]
        %v333 = vld [vmem:[%s330 + $0x18] sm:$0xff]
        %v334 = vld [vmem:[%s330 + $0x20] sm:$0xff]
        %v335 = vld [vmem:[%s330 + $0x30] sm:$0xff]
        %v336 = vld [vmem:[%s330 + $0x38] sm:$0xff]
        %v337 = vld [vmem:[%s330 + $0x48] sm:$0xff]
        %v338 = vld [vmem:[%s330 + $0x50] sm:$0xff]
        %v339 = vld [vmem:[%s330 + $0x60] sm:$0xff]
        %v340 = vld [vmem:[%s330 + $0x68] sm:$0xff]
        %v341 = vld [vmem:[%s330 + $0x78] sm:$0xff]
        %v342 = vld [vmem:[%s330 + $0x80] sm:$0xff]
        %v343 = vld [vmem:[%s330 + $0x90] sm:$0xff]
        %v344 = vld [vmem:[%s330 + $0x98] sm:$0xff]
        %v345 = vld [vmem:[%s330 + $0xa8] sm:$0xff]
        %v346 = vld [vmem:[%s330 + $0xb0] sm:$0xff]
        %v347 = vld [vmem:[%s330 + $0x1] sm:$0xff]
        %v348 = vld [vmem:[%s330 + $0x9] sm:$0xff]
        %v349 = vld [vmem:[%s330 + $0x19] sm:$0xff]
        %v350 = vld [vmem:[%s330 + $0x21] sm:$0xff]
        %v351 = vld [vmem:[%s330 + $0x31] sm:$0xff]
        %v352 = vld [vmem:[%s330 + $0x39] sm:$0xff]
        %v353 = vld [vmem:[%s330 + $0x49] sm:$0xff]
        %v354 = vld [vmem:[%s330 + $0x51] sm:$0xff]
        %v355 = vld [vmem:[%s330 + $0x61] sm:$0xff]
        %v356 = vld [vmem:[%s330 + $0x69] sm:$0xff]
        %v357 = vld [vmem:[%s330 + $0x79] sm:$0xff]
        %v358 = vld [vmem:[%s330 + $0x81] sm:$0xff]
        %v359 = vld [vmem:[%s330 + $0x91] sm:$0xff]
        %v360 = vld [vmem:[%s330 + $0x99] sm:$0xff]
        %v361 = vld [vmem:[%s330 + $0xa9] sm:$0xff]
        %v362 = vld [vmem:[%s330 + $0xb1] sm:$0xff]
        %v363 = vld [vmem:[%s330 + $0x2] sm:$0xff]
        %v364 = vld [vmem:[%s330 + $0xa] sm:$0xff]
        %v365 = vld [vmem:[%s330 + $0x1a] sm:$0xff]
        %v366 = vld [vmem:[%s330 + $0x22] sm:$0xff]
        %v367 = vld [vmem:[%s330 + $0x32] sm:$0xff]
        %v368 = vld [vmem:[%s330 + $0x3a] sm:$0xff]
        %v369 = vld [vmem:[%s330 + $0x4a] sm:$0xff]
        %v370 = vld [vmem:[%s330 + $0x52] sm:$0xff]
        %v371 = vld [vmem:[%s330 + $0x62] sm:$0xff]
        %v372 = vld [vmem:[%s330 + $0x6a] sm:$0xff]
        %v373 = vld [vmem:[%s330 + $0x7a] sm:$0xff]
        %v374 = vld [vmem:[%s330 + $0x82] sm:$0xff]
        %v375 = vld [vmem:[%s330 + $0x92] sm:$0xff]
        %v376 = vld [vmem:[%s330 + $0x9a] sm:$0xff]
        %v377 = vld [vmem:[%s330 + $0xaa] sm:$0xff]
        %v378 = vld [vmem:[%s330 + $0xb2] sm:$0xff]
        %v379 = vld [vmem:[%s330 + $0x3] sm:$0xff]
        %v380 = vld [vmem:[%s330 + $0xb] sm:$0xff]
        %v381 = vld [vmem:[%s330 + $0x1b] sm:$0xff]
        %v382 = vld [vmem:[%s330 + $0x23] sm:$0xff]
        %v383 = vld [vmem:[%s330 + $0x33] sm:$0xff]
        %v384 = vld [vmem:[%s330 + $0x3b] sm:$0xff]
        %v385 = vld [vmem:[%s330 + $0x4b] sm:$0xff]
        %v386 = vld [vmem:[%s330 + $0x53] sm:$0xff]
        %v387 = vld [vmem:[%s330 + $0x63] sm:$0xff]
        %v388 = vld [vmem:[%s330 + $0x6b] sm:$0xff]
        %v389 = vld [vmem:[%s330 + $0x7b] sm:$0xff]
        %v390 = vld [vmem:[%s330 + $0x83] sm:$0xff]
        %v391 = vld [vmem:[%s330 + $0x93] sm:$0xff]
        %v392 = vld [vmem:[%s330 + $0x9b] sm:$0xff]
        %v393 = vld [vmem:[%s330 + $0xab] sm:$0xff]
        %v394 = vld [vmem:[%s330 + $0xb3] sm:$0xff]
        %v395 = vld [vmem:[%s330 + $0x4] sm:$0xff]
        %v396 = vld [vmem:[%s330 + $0xc] sm:$0xff]
        %v397 = vld [vmem:[%s330 + $0x1c] sm:$0xff]
        %v398 = vld [vmem:[%s330 + $0x24] sm:$0xff]
        %v399 = vld [vmem:[%s330 + $0x34] sm:$0xff]
        %v400 = vld [vmem:[%s330 + $0x3c] sm:$0xff]
        %v401 = vld [vmem:[%s330 + $0x4c] sm:$0xff]
        %v402 = vld [vmem:[%s330 + $0x54] sm:$0xff]
        %v403 = vld [vmem:[%s330 + $0x64] sm:$0xff]
        %v404 = vld [vmem:[%s330 + $0x6c] sm:$0xff]
        %v405 = vld [vmem:[%s330 + $0x7c] sm:$0xff]
        %v406 = vld [vmem:[%s330 + $0x84] sm:$0xff]
        %v407 = vld [vmem:[%s330 + $0x94] sm:$0xff]
        %v408 = vld [vmem:[%s330 + $0x9c] sm:$0xff]
        %v409 = vld [vmem:[%s330 + $0xac] sm:$0xff]
        %v410 = vld [vmem:[%s330 + $0xb4] sm:$0xff]
        %427 = vrot.lane.b32.xlu0 %v185, 4
        %v428 = vpop.permute.xlu0 %427
        %429 = vrot.lane.b32.xlu0 %v186, 4
        %v430 = vpop.permute.xlu0 %429
        %431 = vrot.lane.b32.xlu0 %v187, 4
        %v432 = vpop.permute.xlu0 %431
        %433 = vrot.lane.b32.xlu0 %v188, 4
        %v434 = vpop.permute.xlu0 %433
        %435 = vrot.lane.b32.xlu0 %v189, 4
        %v436 = vpop.permute.xlu0 %435
        %437 = vrot.lane.b32.xlu0 %v190, 4
        %v438 = vpop.permute.xlu0 %437
        %439 = vrot.lane.b32.xlu0 %v191, 4
        %v440 = vpop.permute.xlu0 %439
        %441 = vrot.lane.b32.xlu0 %v192, 4
        %v442 = vpop.permute.xlu0 %441
        %443 = vrot.lane.b32.xlu0 %v193, 4
        %v444 = vpop.permute.xlu0 %443
        %445 = vrot.lane.b32.xlu0 %v194, 4
        %v446 = vpop.permute.xlu0 %445
        %447 = vrot.lane.b32.xlu0 %v195, 4
        %v448 = vpop.permute.xlu0 %447
        %449 = vrot.lane.b32.xlu0 %v196, 4
        %v450 = vpop.permute.xlu0 %449
        %451 = vrot.lane.b32.xlu0 %v197, 4
        %v452 = vpop.permute.xlu0 %451
        %453 = vrot.lane.b32.xlu0 %v198, 4
        %v454 = vpop.permute.xlu0 %453
        %455 = vrot.lane.b32.xlu0 %v199, 4
        %v456 = vpop.permute.xlu0 %455
        %457 = vrot.lane.b32.xlu0 %v200, 4
        %v458 = vpop.permute.xlu0 %457
        %491 = vrot.lane.b32.xlu0 %v201, 8
        %v492 = vpop.permute.xlu0 %491
        %493 = vrot.lane.b32.xlu0 %v202, 8
        %v494 = vpop.permute.xlu0 %493
        %495 = vrot.lane.b32.xlu0 %v203, 8
        %v496 = vpop.permute.xlu0 %495
        %497 = vrot.lane.b32.xlu0 %v204, 8
        %v498 = vpop.permute.xlu0 %497
        %499 = vrot.lane.b32.xlu0 %v205, 8
        %v500 = vpop.permute.xlu0 %499
        %501 = vrot.lane.b32.xlu0 %v206, 8
        %v502 = vpop.permute.xlu0 %501
        %503 = vrot.lane.b32.xlu0 %v207, 8
        %v504 = vpop.permute.xlu0 %503
        %505 = vrot.lane.b32.xlu0 %v208, 8
        %v506 = vpop.permute.xlu0 %505
        %507 = vrot.lane.b32.xlu0 %v209, 8
        %v508 = vpop.permute.xlu0 %507
        %509 = vrot.lane.b32.xlu0 %v210, 8
        %v510 = vpop.permute.xlu0 %509
        %511 = vrot.lane.b32.xlu0 %v211, 8
        %v512 = vpop.permute.xlu0 %511
        %513 = vrot.lane.b32.xlu0 %v212, 8
        %v514 = vpop.permute.xlu0 %513
        %515 = vrot.lane.b32.xlu0 %v213, 8
        %v516 = vpop.permute.xlu0 %515
        %517 = vrot.lane.b32.xlu0 %v214, 8
        %v518 = vpop.permute.xlu0 %517
        %519 = vrot.lane.b32.xlu0 %v215, 8
        %v520 = vpop.permute.xlu0 %519
        %521 = vrot.lane.b32.xlu0 %v216, 8
        %v522 = vpop.permute.xlu0 %521
        %555 = vrot.lane.b32.xlu0 %v217, 12
        %v556 = vpop.permute.xlu0 %555
        %557 = vrot.lane.b32.xlu0 %v218, 12
        %v558 = vpop.permute.xlu0 %557
        %559 = vrot.lane.b32.xlu0 %v219, 12
        %v560 = vpop.permute.xlu0 %559
        %561 = vrot.lane.b32.xlu0 %v220, 12
        %v562 = vpop.permute.xlu0 %561
        %563 = vrot.lane.b32.xlu0 %v221, 12
        %v564 = vpop.permute.xlu0 %563
        %565 = vrot.lane.b32.xlu0 %v222, 12
        %v566 = vpop.permute.xlu0 %565
        %567 = vrot.lane.b32.xlu0 %v223, 12
        %v568 = vpop.permute.xlu0 %567
        %569 = vrot.lane.b32.xlu0 %v224, 12
        %v570 = vpop.permute.xlu0 %569
        %571 = vrot.lane.b32.xlu0 %v225, 12
        %v572 = vpop.permute.xlu0 %571
        %573 = vrot.lane.b32.xlu0 %v226, 12
        %v574 = vpop.permute.xlu0 %573
        %575 = vrot.lane.b32.xlu0 %v227, 12
        %v576 = vpop.permute.xlu0 %575
        %577 = vrot.lane.b32.xlu0 %v228, 12
        %v578 = vpop.permute.xlu0 %577
        %579 = vrot.lane.b32.xlu0 %v229, 12
        %v580 = vpop.permute.xlu0 %579
        %581 = vrot.lane.b32.xlu0 %v230, 12
        %v582 = vpop.permute.xlu0 %581
        %583 = vrot.lane.b32.xlu0 %v231, 12
        %v584 = vpop.permute.xlu0 %583
        %585 = vrot.lane.b32.xlu0 %v232, 12
        %v586 = vpop.permute.xlu0 %585
        %619 = vrot.lane.b32.xlu0 %v233, 16
        %v620 = vpop.permute.xlu0 %619
        %621 = vrot.lane.b32.xlu0 %v234, 16
        %v622 = vpop.permute.xlu0 %621
        %623 = vrot.lane.b32.xlu0 %v235, 16
        %v624 = vpop.permute.xlu0 %623
        %625 = vrot.lane.b32.xlu0 %v236, 16
        %v626 = vpop.permute.xlu0 %625
        %627 = vrot.lane.b32.xlu0 %v237, 16
        %v628 = vpop.permute.xlu0 %627
        %629 = vrot.lane.b32.xlu0 %v238, 16
        %v630 = vpop.permute.xlu0 %629
        %631 = vrot.lane.b32.xlu0 %v239, 16
        %v632 = vpop.permute.xlu0 %631
        %633 = vrot.lane.b32.xlu0 %v240, 16
        %v634 = vpop.permute.xlu0 %633
        %635 = vrot.lane.b32.xlu0 %v241, 16
        %v636 = vpop.permute.xlu0 %635
        %637 = vrot.lane.b32.xlu0 %v242, 16
        %v638 = vpop.permute.xlu0 %637
        %639 = vrot.lane.b32.xlu0 %v243, 16
        %v640 = vpop.permute.xlu0 %639
        %641 = vrot.lane.b32.xlu0 %v244, 16
        %v642 = vpop.permute.xlu0 %641
        %643 = vrot.lane.b32.xlu0 %v245, 16
        %v644 = vpop.permute.xlu0 %643
        %645 = vrot.lane.b32.xlu0 %v246, 16
        %v646 = vpop.permute.xlu0 %645
        %647 = vrot.lane.b32.xlu0 %v247, 16
        %v648 = vpop.permute.xlu0 %647
        %649 = vrot.lane.b32.xlu0 %v248, 16
        %v650 = vpop.permute.xlu0 %649
        %683 = vrot.lane.b32.xlu0 %v250, 20
        %v684 = vpop.permute.xlu0 %683
        %685 = vrot.lane.b32.xlu0 %v251, 20
        %v686 = vpop.permute.xlu0 %685
        %687 = vrot.lane.b32.xlu0 %v252, 20
        %v688 = vpop.permute.xlu0 %687
        %689 = vrot.lane.b32.xlu0 %v253, 20
        %v690 = vpop.permute.xlu0 %689
        %691 = vrot.lane.b32.xlu0 %v254, 20
        %v692 = vpop.permute.xlu0 %691
        %693 = vrot.lane.b32.xlu0 %v255, 20
        %v694 = vpop.permute.xlu0 %693
        %695 = vrot.lane.b32.xlu0 %v256, 20
        %v696 = vpop.permute.xlu0 %695
        %697 = vrot.lane.b32.xlu0 %v257, 20
        %v698 = vpop.permute.xlu0 %697
        %699 = vrot.lane.b32.xlu0 %v258, 20
        %v700 = vpop.permute.xlu0 %699
        %701 = vrot.lane.b32.xlu0 %v259, 20
        %v702 = vpop.permute.xlu0 %701
        %703 = vrot.lane.b32.xlu0 %v260, 20
        %v704 = vpop.permute.xlu0 %703
        %705 = vrot.lane.b32.xlu0 %v261, 20
        %v706 = vpop.permute.xlu0 %705
        %707 = vrot.lane.b32.xlu0 %v262, 20
        %v708 = vpop.permute.xlu0 %707
        %709 = vrot.lane.b32.xlu0 %v263, 20
        %v710 = vpop.permute.xlu0 %709
        %711 = vrot.lane.b32.xlu0 %v264, 20
        %v712 = vpop.permute.xlu0 %711
        %713 = vrot.lane.b32.xlu0 %v265, 20
        %v714 = vpop.permute.xlu0 %713
        %747 = vrot.lane.b32.xlu0 %v266, 24
        %v748 = vpop.permute.xlu0 %747
        %749 = vrot.lane.b32.xlu0 %v267, 24
        %v750 = vpop.permute.xlu0 %749
        %751 = vrot.lane.b32.xlu0 %v268, 24
        %v752 = vpop.permute.xlu0 %751
        %753 = vrot.lane.b32.xlu0 %v269, 24
        %v754 = vpop.permute.xlu0 %753
        %755 = vrot.lane.b32.xlu0 %v270, 24
        %v756 = vpop.permute.xlu0 %755
        %757 = vrot.lane.b32.xlu0 %v271, 24
        %v758 = vpop.permute.xlu0 %757
        %759 = vrot.lane.b32.xlu0 %v272, 24
        %v760 = vpop.permute.xlu0 %759
        %761 = vrot.lane.b32.xlu0 %v273, 24
        %v762 = vpop.permute.xlu0 %761
        %763 = vrot.lane.b32.xlu0 %v274, 24
        %v764 = vpop.permute.xlu0 %763
        %765 = vrot.lane.b32.xlu0 %v275, 24
        %v766 = vpop.permute.xlu0 %765
        %767 = vrot.lane.b32.xlu0 %v276, 24
        %v768 = vpop.permute.xlu0 %767
        %769 = vrot.lane.b32.xlu0 %v277, 24
        %v770 = vpop.permute.xlu0 %769
        %771 = vrot.lane.b32.xlu0 %v278, 24
        %v772 = vpop.permute.xlu0 %771
        %773 = vrot.lane.b32.xlu0 %v279, 24
        %v774 = vpop.permute.xlu0 %773
        %775 = vrot.lane.b32.xlu0 %v280, 24
        %v776 = vpop.permute.xlu0 %775
        %777 = vrot.lane.b32.xlu0 %v281, 24
        %v778 = vpop.permute.xlu0 %777
        %811 = vrot.lane.b32.xlu0 %v282, 28
        %v812 = vpop.permute.xlu0 %811
        %813 = vrot.lane.b32.xlu0 %v283, 28
        %v814 = vpop.permute.xlu0 %813
        %815 = vrot.lane.b32.xlu0 %v284, 28
        %v816 = vpop.permute.xlu0 %815
        %817 = vrot.lane.b32.xlu0 %v285, 28
        %v818 = vpop.permute.xlu0 %817
        %819 = vrot.lane.b32.xlu0 %v286, 28
        %v820 = vpop.permute.xlu0 %819
        %821 = vrot.lane.b32.xlu0 %v287, 28
        %v822 = vpop.permute.xlu0 %821
        %823 = vrot.lane.b32.xlu0 %v288, 28
        %v824 = vpop.permute.xlu0 %823
        %825 = vrot.lane.b32.xlu0 %v289, 28
        %v826 = vpop.permute.xlu0 %825
        %827 = vrot.lane.b32.xlu0 %v290, 28
        %v828 = vpop.permute.xlu0 %827
        %829 = vrot.lane.b32.xlu0 %v291, 28
        %v830 = vpop.permute.xlu0 %829
        %831 = vrot.lane.b32.xlu0 %v292, 28
        %v832 = vpop.permute.xlu0 %831
        %833 = vrot.lane.b32.xlu0 %v293, 28
        %v834 = vpop.permute.xlu0 %833
        %835 = vrot.lane.b32.xlu0 %v294, 28
        %v836 = vpop.permute.xlu0 %835
        %837 = vrot.lane.b32.xlu0 %v295, 28
        %v838 = vpop.permute.xlu0 %837
        %839 = vrot.lane.b32.xlu0 %v296, 28
        %v840 = vpop.permute.xlu0 %839
        %841 = vrot.lane.b32.xlu0 %v297, 28
        %v842 = vpop.permute.xlu0 %841
        %875 = vrot.lane.b32.xlu0 %v298, 32
        %v876 = vpop.permute.xlu0 %875
        %877 = vrot.lane.b32.xlu0 %v299, 32
        %v878 = vpop.permute.xlu0 %877
        %879 = vrot.lane.b32.xlu0 %v300, 32
        %v880 = vpop.permute.xlu0 %879
        %881 = vrot.lane.b32.xlu0 %v301, 32
        %v882 = vpop.permute.xlu0 %881
        %883 = vrot.lane.b32.xlu0 %v302, 32
        %v884 = vpop.permute.xlu0 %883
        %885 = vrot.lane.b32.xlu0 %v303, 32
        %v886 = vpop.permute.xlu0 %885
        %887 = vrot.lane.b32.xlu0 %v304, 32
        %v888 = vpop.permute.xlu0 %887
        %889 = vrot.lane.b32.xlu0 %v305, 32
        %v890 = vpop.permute.xlu0 %889
        %891 = vrot.lane.b32.xlu0 %v306, 32
        %v892 = vpop.permute.xlu0 %891
        %893 = vrot.lane.b32.xlu0 %v307, 32
        %v894 = vpop.permute.xlu0 %893
        %895 = vrot.lane.b32.xlu0 %v308, 32
        %v896 = vpop.permute.xlu0 %895
        %897 = vrot.lane.b32.xlu0 %v309, 32
        %v898 = vpop.permute.xlu0 %897
        %899 = vrot.lane.b32.xlu0 %v310, 32
        %v900 = vpop.permute.xlu0 %899
        %901 = vrot.lane.b32.xlu0 %v311, 32
        %v902 = vpop.permute.xlu0 %901
        %903 = vrot.lane.b32.xlu0 %v312, 32
        %v904 = vpop.permute.xlu0 %903
        %905 = vrot.lane.b32.xlu0 %v313, 32
        %v906 = vpop.permute.xlu0 %905
        %939 = vrot.lane.b32.xlu0 %v314, 36
        %v940 = vpop.permute.xlu0 %939
        %941 = vrot.lane.b32.xlu0 %v315, 36
        %v942 = vpop.permute.xlu0 %941
        %943 = vrot.lane.b32.xlu0 %v316, 36
        %v944 = vpop.permute.xlu0 %943
        %945 = vrot.lane.b32.xlu0 %v317, 36
        %v946 = vpop.permute.xlu0 %945
        %947 = vrot.lane.b32.xlu0 %v318, 36
        %v948 = vpop.permute.xlu0 %947
        %949 = vrot.lane.b32.xlu0 %v319, 36
        %v950 = vpop.permute.xlu0 %949
        %951 = vrot.lane.b32.xlu0 %v320, 36
        %v952 = vpop.permute.xlu0 %951
        %953 = vrot.lane.b32.xlu0 %v321, 36
        %v954 = vpop.permute.xlu0 %953
        %955 = vrot.lane.b32.xlu0 %v322, 36
        %v956 = vpop.permute.xlu0 %955
        %957 = vrot.lane.b32.xlu0 %v323, 36
        %v958 = vpop.permute.xlu0 %957
        %959 = vrot.lane.b32.xlu0 %v324, 36
        %v960 = vpop.permute.xlu0 %959
        %961 = vrot.lane.b32.xlu0 %v325, 36
        %v962 = vpop.permute.xlu0 %961
        %963 = vrot.lane.b32.xlu0 %v326, 36
        %v964 = vpop.permute.xlu0 %963
        %965 = vrot.lane.b32.xlu0 %v327, 36
        %v966 = vpop.permute.xlu0 %965
        %967 = vrot.lane.b32.xlu0 %v328, 36
        %v968 = vpop.permute.xlu0 %967
        %969 = vrot.lane.b32.xlu0 %v329, 36
        %v970 = vpop.permute.xlu0 %969
        %1003 = vrot.lane.b32.xlu0 %v331, 40
        %v1004 = vpop.permute.xlu0 %1003
        %1005 = vrot.lane.b32.xlu0 %v332, 40
        %v1006 = vpop.permute.xlu0 %1005
        %1007 = vrot.lane.b32.xlu0 %v333, 40
        %v1008 = vpop.permute.xlu0 %1007
        %1009 = vrot.lane.b32.xlu0 %v334, 40
        %v1010 = vpop.permute.xlu0 %1009
        %1011 = vrot.lane.b32.xlu0 %v335, 40
        %v1012 = vpop.permute.xlu0 %1011
        %1013 = vrot.lane.b32.xlu0 %v336, 40
        %v1014 = vpop.permute.xlu0 %1013
        %1015 = vrot.lane.b32.xlu0 %v337, 40
        %v1016 = vpop.permute.xlu0 %1015
        %1017 = vrot.lane.b32.xlu0 %v338, 40
        %v1018 = vpop.permute.xlu0 %1017
        %1019 = vrot.lane.b32.xlu0 %v339, 40
        %v1020 = vpop.permute.xlu0 %1019
        %1021 = vrot.lane.b32.xlu0 %v340, 40
        %v1022 = vpop.permute.xlu0 %1021
        %1023 = vrot.lane.b32.xlu0 %v341, 40
        %v1024 = vpop.permute.xlu0 %1023
        %1025 = vrot.lane.b32.xlu0 %v342, 40
        %v1026 = vpop.permute.xlu0 %1025
        %1027 = vrot.lane.b32.xlu0 %v343, 40
        %v1028 = vpop.permute.xlu0 %1027
        %1029 = vrot.lane.b32.xlu0 %v344, 40
        %v1030 = vpop.permute.xlu0 %1029
        %1031 = vrot.lane.b32.xlu0 %v345, 40
        %v1032 = vpop.permute.xlu0 %1031
        %1033 = vrot.lane.b32.xlu0 %v346, 40
        %v1034 = vpop.permute.xlu0 %1033
        %1067 = vrot.lane.b32.xlu0 %v347, 44
        %v1068 = vpop.permute.xlu0 %1067
        %1069 = vrot.lane.b32.xlu0 %v348, 44
        %v1070 = vpop.permute.xlu0 %1069
        %1071 = vrot.lane.b32.xlu0 %v349, 44
        %v1072 = vpop.permute.xlu0 %1071
        %1073 = vrot.lane.b32.xlu0 %v350, 44
        %v1074 = vpop.permute.xlu0 %1073
        %1075 = vrot.lane.b32.xlu0 %v351, 44
        %v1076 = vpop.permute.xlu0 %1075
        %1077 = vrot.lane.b32.xlu0 %v352, 44
        %v1078 = vpop.permute.xlu0 %1077
        %1079 = vrot.lane.b32.xlu0 %v353, 44
        %v1080 = vpop.permute.xlu0 %1079
        %1081 = vrot.lane.b32.xlu0 %v354, 44
        %v1082 = vpop.permute.xlu0 %1081
        %1083 = vrot.lane.b32.xlu0 %v355, 44
        %v1084 = vpop.permute.xlu0 %1083
        %1085 = vrot.lane.b32.xlu0 %v356, 44
        %v1086 = vpop.permute.xlu0 %1085
        %1087 = vrot.lane.b32.xlu0 %v357, 44
        %v1088 = vpop.permute.xlu0 %1087
        %1089 = vrot.lane.b32.xlu0 %v358, 44
        %v1090 = vpop.permute.xlu0 %1089
        %1091 = vrot.lane.b32.xlu0 %v359, 44
        %v1092 = vpop.permute.xlu0 %1091
        %1093 = vrot.lane.b32.xlu0 %v360, 44
        %v1094 = vpop.permute.xlu0 %1093
        %1095 = vrot.lane.b32.xlu0 %v361, 44
        %v1096 = vpop.permute.xlu0 %1095
        %1097 = vrot.lane.b32.xlu0 %v362, 44
        %v1098 = vpop.permute.xlu0 %1097
        %1131 = vrot.lane.b32.xlu0 %v363, 48
        %v1132 = vpop.permute.xlu0 %1131
        %1133 = vrot.lane.b32.xlu0 %v364, 48
        %v1134 = vpop.permute.xlu0 %1133
        %1135 = vrot.lane.b32.xlu0 %v365, 48
        %v1136 = vpop.permute.xlu0 %1135
        %1137 = vrot.lane.b32.xlu0 %v366, 48
        %v1138 = vpop.permute.xlu0 %1137
        %1139 = vrot.lane.b32.xlu0 %v367, 48
        %v1140 = vpop.permute.xlu0 %1139
        %1141 = vrot.lane.b32.xlu0 %v368, 48
        %v1142 = vpop.permute.xlu0 %1141
        %1143 = vrot.lane.b32.xlu0 %v369, 48
        %v1144 = vpop.permute.xlu0 %1143
        %1145 = vrot.lane.b32.xlu0 %v370, 48
        %v1146 = vpop.permute.xlu0 %1145
        %1147 = vrot.lane.b32.xlu0 %v371, 48
        %v1148 = vpop.permute.xlu0 %1147
        %1149 = vrot.lane.b32.xlu0 %v372, 48
        %v1150 = vpop.permute.xlu0 %1149
        %1151 = vrot.lane.b32.xlu0 %v373, 48
        %v1152 = vpop.permute.xlu0 %1151
        %1153 = vrot.lane.b32.xlu0 %v374, 48
        %v1154 = vpop.permute.xlu0 %1153
        %1155 = vrot.lane.b32.xlu0 %v375, 48
        %v1156 = vpop.permute.xlu0 %1155
        %1157 = vrot.lane.b32.xlu0 %v376, 48
        %v1158 = vpop.permute.xlu0 %1157
        %1159 = vrot.lane.b32.xlu0 %v377, 48
        %v1160 = vpop.permute.xlu0 %1159
        %1161 = vrot.lane.b32.xlu0 %v378, 48
        %v1162 = vpop.permute.xlu0 %1161
        %1195 = vrot.lane.b32.xlu0 %v379, 52
        %v1196 = vpop.permute.xlu0 %1195
        %1197 = vrot.lane.b32.xlu0 %v380, 52
        %v1198 = vpop.permute.xlu0 %1197
        %1199 = vrot.lane.b32.xlu0 %v381, 52
        %v1200 = vpop.permute.xlu0 %1199
        %1201 = vrot.lane.b32.xlu0 %v382, 52
        %v1202 = vpop.permute.xlu0 %1201
        %1203 = vrot.lane.b32.xlu0 %v383, 52
        %v1204 = vpop.permute.xlu0 %1203
        %1205 = vrot.lane.b32.xlu0 %v384, 52
        %v1206 = vpop.permute.xlu0 %1205
        %1207 = vrot.lane.b32.xlu0 %v385, 52
        %v1208 = vpop.permute.xlu0 %1207
        %1209 = vrot.lane.b32.xlu0 %v386, 52
        %v1210 = vpop.permute.xlu0 %1209
        %1211 = vrot.lane.b32.xlu0 %v387, 52
        %v1212 = vpop.permute.xlu0 %1211
        %1213 = vrot.lane.b32.xlu0 %v388, 52
        %v1214 = vpop.permute.xlu0 %1213
        %1215 = vrot.lane.b32.xlu0 %v389, 52
        %v1216 = vpop.permute.xlu0 %1215
        %1217 = vrot.lane.b32.xlu0 %v390, 52
        %v1218 = vpop.permute.xlu0 %1217
        %1219 = vrot.lane.b32.xlu0 %v391, 52
        %v1220 = vpop.permute.xlu0 %1219
        %1221 = vrot.lane.b32.xlu0 %v392, 52
        %v1222 = vpop.permute.xlu0 %1221
        %1223 = vrot.lane.b32.xlu0 %v393, 52
        %v1224 = vpop.permute.xlu0 %1223
        %1225 = vrot.lane.b32.xlu0 %v394, 52
        %v1226 = vpop.permute.xlu0 %1225
        %1259 = vrot.lane.b32.xlu0 %v395, 56
        %v1260 = vpop.permute.xlu0 %1259
        %1261 = vrot.lane.b32.xlu0 %v396, 56
        %v1262 = vpop.permute.xlu0 %1261
        %1263 = vrot.lane.b32.xlu0 %v397, 56
        %v1264 = vpop.permute.xlu0 %1263
        %1265 = vrot.lane.b32.xlu0 %v398, 56
        %v1266 = vpop.permute.xlu0 %1265
        %1267 = vrot.lane.b32.xlu0 %v399, 56
        %v1268 = vpop.permute.xlu0 %1267
        %1269 = vrot.lane.b32.xlu0 %v400, 56
        %v1270 = vpop.permute.xlu0 %1269
        %1271 = vrot.lane.b32.xlu0 %v401, 56
        %v1272 = vpop.permute.xlu0 %1271
        %1273 = vrot.lane.b32.xlu0 %v402, 56
        %v1274 = vpop.permute.xlu0 %1273
        %1275 = vrot.lane.b32.xlu0 %v403, 56
        %v1276 = vpop.permute.xlu0 %1275
        %1277 = vrot.lane.b32.xlu0 %v404, 56
        %v1278 = vpop.permute.xlu0 %1277
        %1279 = vrot.lane.b32.xlu0 %v405, 56
        %v1280 = vpop.permute.xlu0 %1279
        %1281 = vrot.lane.b32.xlu0 %v406, 56
        %v1282 = vpop.permute.xlu0 %1281
        %1283 = vrot.lane.b32.xlu0 %v407, 56
        %v1284 = vpop.permute.xlu0 %1283
        %1285 = vrot.lane.b32.xlu0 %v408, 56
        %v1286 = vpop.permute.xlu0 %1285
        %1287 = vrot.lane.b32.xlu0 %v409, 56
        %v1288 = vpop.permute.xlu0 %1287
        %1289 = vrot.lane.b32.xlu0 %v410, 56
        %v1290 = vpop.permute.xlu0 %1289
        %vm1307 = vcmask 31744
        %v1308 = vsel %vm1307, %v169, %v428
        %v1309 = vsel %vm1307, %v170, %v430
        %v1310 = vsel %vm1307, %v171, %v432
        %v1311 = vsel %vm1307, %v172, %v434
        %v1312 = vsel %vm1307, %v173, %v436
        %v1313 = vsel %vm1307, %v174, %v438
        %v1314 = vsel %vm1307, %v175, %v440
        %v1315 = vsel %vm1307, %v176, %v442
        %v1316 = vsel %vm1307, %v177, %v444
        %v1317 = vsel %vm1307, %v178, %v446
        %v1318 = vsel %vm1307, %v179, %v448
        %v1319 = vsel %vm1307, %v180, %v450
        %v1320 = vsel %vm1307, %v181, %v452
        %v1321 = vsel %vm1307, %v182, %v454
        %v1322 = vsel %vm1307, %v183, %v456
        %v1323 = vsel %vm1307, %v184, %v458
        %vm1324 = vcmask 64512
        %v1325 = vsel %vm1324, %v1308, %v492
        %v1326 = vsel %vm1324, %v1309, %v494
        %v1327 = vsel %vm1324, %v1310, %v496
        %v1328 = vsel %vm1324, %v1311, %v498
        %v1329 = vsel %vm1324, %v1312, %v500
        %v1330 = vsel %vm1324, %v1313, %v502
        %v1331 = vsel %vm1324, %v1314, %v504
        %v1332 = vsel %vm1324, %v1315, %v506
        %v1333 = vsel %vm1324, %v1316, %v508
        %v1334 = vsel %vm1324, %v1317, %v510
        %v1335 = vsel %vm1324, %v1318, %v512
        %v1336 = vsel %vm1324, %v1319, %v514
        %v1337 = vsel %vm1324, %v1320, %v516
        %v1338 = vsel %vm1324, %v1321, %v518
        %v1339 = vsel %vm1324, %v1322, %v520
        %v1340 = vsel %vm1324, %v1323, %v522
        %vm1341 = vcmask 97280
        %v1342 = vsel %vm1341, %v1325, %v556
        %v1343 = vsel %vm1341, %v1326, %v558
        %v1344 = vsel %vm1341, %v1327, %v560
        %v1345 = vsel %vm1341, %v1328, %v562
        %v1346 = vsel %vm1341, %v1329, %v564
        %v1347 = vsel %vm1341, %v1330, %v566
        %v1348 = vsel %vm1341, %v1331, %v568
        %v1349 = vsel %vm1341, %v1332, %v570
        %v1350 = vsel %vm1341, %v1333, %v572
        %v1351 = vsel %vm1341, %v1334, %v574
        %v1352 = vsel %vm1341, %v1335, %v576
        %v1353 = vsel %vm1341, %v1336, %v578
        %v1354 = vsel %vm1341, %v1337, %v580
        %v1355 = vsel %vm1341, %v1338, %v582
        %v1356 = vsel %vm1341, %v1339, %v584
        %v1357 = vsel %vm1341, %v1340, %v586
        %vm1358 = vcmask 130048
        %v1359 = vsel %vm1358, %v1342, %v620
        %v1360 = vsel %vm1358, %v1343, %v622
        %v1361 = vsel %vm1358, %v1344, %v624
        %v1362 = vsel %vm1358, %v1345, %v626
        %v1363 = vsel %vm1358, %v1346, %v628
        %v1364 = vsel %vm1358, %v1347, %v630
        %v1365 = vsel %vm1358, %v1348, %v632
        %v1366 = vsel %vm1358, %v1349, %v634
        %v1367 = vsel %vm1358, %v1350, %v636
        %v1368 = vsel %vm1358, %v1351, %v638
        %v1369 = vsel %vm1358, %v1352, %v640
        %v1370 = vsel %vm1358, %v1353, %v642
        %v1371 = vsel %vm1358, %v1354, %v644
        %v1372 = vsel %vm1358, %v1355, %v646
        %v1373 = vsel %vm1358, %v1356, %v648
        %v1374 = vsel %vm1358, %v1357, %v650
        %vm1375 = vcmask 162816
        %v1376 = vsel %vm1375, %v1359, %v684
        %v1377 = vsel %vm1375, %v1360, %v686
        %v1378 = vsel %vm1375, %v1361, %v688
        %v1379 = vsel %vm1375, %v1362, %v690
        %v1380 = vsel %vm1375, %v1363, %v692
        %v1381 = vsel %vm1375, %v1364, %v694
        %v1382 = vsel %vm1375, %v1365, %v696
        %v1383 = vsel %vm1375, %v1366, %v698
        %v1384 = vsel %vm1375, %v1367, %v700
        %v1385 = vsel %vm1375, %v1368, %v702
        %v1386 = vsel %vm1375, %v1369, %v704
        %v1387 = vsel %vm1375, %v1370, %v706
        %v1388 = vsel %vm1375, %v1371, %v708
        %v1389 = vsel %vm1375, %v1372, %v710
        %v1390 = vsel %vm1375, %v1373, %v712
        %v1391 = vsel %vm1375, %v1374, %v714
        %vm1392 = vcmask 195584
        %v1393 = vsel %vm1392, %v1376, %v748
        %v1394 = vsel %vm1392, %v1377, %v750
        %v1395 = vsel %vm1392, %v1378, %v752
        %v1396 = vsel %vm1392, %v1379, %v754
        %v1397 = vsel %vm1392, %v1380, %v756
        %v1398 = vsel %vm1392, %v1381, %v758
        %v1399 = vsel %vm1392, %v1382, %v760
        %v1400 = vsel %vm1392, %v1383, %v762
        %v1401 = vsel %vm1392, %v1384, %v764
        %v1402 = vsel %vm1392, %v1385, %v766
        %v1403 = vsel %vm1392, %v1386, %v768
        %v1404 = vsel %vm1392, %v1387, %v770
        %v1405 = vsel %vm1392, %v1388, %v772
        %v1406 = vsel %vm1392, %v1389, %v774
        %v1407 = vsel %vm1392, %v1390, %v776
        %v1408 = vsel %vm1392, %v1391, %v778
        %vm1409 = vcmask 228352
        %v1410 = vsel %vm1409, %v1393, %v812
        %v1411 = vsel %vm1409, %v1394, %v814
        %v1412 = vsel %vm1409, %v1395, %v816
        %v1413 = vsel %vm1409, %v1396, %v818
        %v1414 = vsel %vm1409, %v1397, %v820
        %v1415 = vsel %vm1409, %v1398, %v822
        %v1416 = vsel %vm1409, %v1399, %v824
        %v1417 = vsel %vm1409, %v1400, %v826
        %v1418 = vsel %vm1409, %v1401, %v828
        %v1419 = vsel %vm1409, %v1402, %v830
        %v1420 = vsel %vm1409, %v1403, %v832
        %v1421 = vsel %vm1409, %v1404, %v834
        %v1422 = vsel %vm1409, %v1405, %v836
        %v1423 = vsel %vm1409, %v1406, %v838
        %v1424 = vsel %vm1409, %v1407, %v840
        %v1425 = vsel %vm1409, %v1408, %v842
        %vm1426 = vcmask 261120
        %v1427 = vsel %vm1426, %v1410, %v876
        %v1428 = vsel %vm1426, %v1411, %v878
        %v1429 = vsel %vm1426, %v1412, %v880
        %v1430 = vsel %vm1426, %v1413, %v882
        %v1431 = vsel %vm1426, %v1414, %v884
        %v1432 = vsel %vm1426, %v1415, %v886
        %v1433 = vsel %vm1426, %v1416, %v888
        %v1434 = vsel %vm1426, %v1417, %v890
        %v1435 = vsel %vm1426, %v1418, %v892
        %v1436 = vsel %vm1426, %v1419, %v894
        %v1437 = vsel %vm1426, %v1420, %v896
        %v1438 = vsel %vm1426, %v1421, %v898
        %v1439 = vsel %vm1426, %v1422, %v900
        %v1440 = vsel %vm1426, %v1423, %v902
        %v1441 = vsel %vm1426, %v1424, %v904
        %v1442 = vsel %vm1426, %v1425, %v906
        %vm1443 = vcmask 293888
        %v1444 = vsel %vm1443, %v1427, %v940
        %v1445 = vsel %vm1443, %v1428, %v942
        %v1446 = vsel %vm1443, %v1429, %v944
        %v1447 = vsel %vm1443, %v1430, %v946
        %v1448 = vsel %vm1443, %v1431, %v948
        %v1449 = vsel %vm1443, %v1432, %v950
        %v1450 = vsel %vm1443, %v1433, %v952
        %v1451 = vsel %vm1443, %v1434, %v954
        %v1452 = vsel %vm1443, %v1435, %v956
        %v1453 = vsel %vm1443, %v1436, %v958
        %v1454 = vsel %vm1443, %v1437, %v960
        %v1455 = vsel %vm1443, %v1438, %v962
        %v1456 = vsel %vm1443, %v1439, %v964
        %v1457 = vsel %vm1443, %v1440, %v966
        %v1458 = vsel %vm1443, %v1441, %v968
        %v1459 = vsel %vm1443, %v1442, %v970
        %vm1460 = vcmask 326656
        %v1461 = vsel %vm1460, %v1444, %v1004
        %v1462 = vsel %vm1460, %v1445, %v1006
        %v1463 = vsel %vm1460, %v1446, %v1008
        %v1464 = vsel %vm1460, %v1447, %v1010
        %v1465 = vsel %vm1460, %v1448, %v1012
        %v1466 = vsel %vm1460, %v1449, %v1014
        %v1467 = vsel %vm1460, %v1450, %v1016
        %v1468 = vsel %vm1460, %v1451, %v1018
        %v1469 = vsel %vm1460, %v1452, %v1020
        %v1470 = vsel %vm1460, %v1453, %v1022
        %v1471 = vsel %vm1460, %v1454, %v1024
        %v1472 = vsel %vm1460, %v1455, %v1026
        %v1473 = vsel %vm1460, %v1456, %v1028
        %v1474 = vsel %vm1460, %v1457, %v1030
        %v1475 = vsel %vm1460, %v1458, %v1032
        %v1476 = vsel %vm1460, %v1459, %v1034
        %vm1477 = vcmask 359424
        %v1478 = vsel %vm1477, %v1461, %v1068
        %v1479 = vsel %vm1477, %v1462, %v1070
        %v1480 = vsel %vm1477, %v1463, %v1072
        %v1481 = vsel %vm1477, %v1464, %v1074
        %v1482 = vsel %vm1477, %v1465, %v1076
        %v1483 = vsel %vm1477, %v1466, %v1078
        %v1484 = vsel %vm1477, %v1467, %v1080
        %v1485 = vsel %vm1477, %v1468, %v1082
        %v1486 = vsel %vm1477, %v1469, %v1084
        %v1487 = vsel %vm1477, %v1470, %v1086
        %v1488 = vsel %vm1477, %v1471, %v1088
        %v1489 = vsel %vm1477, %v1472, %v1090
        %v1490 = vsel %vm1477, %v1473, %v1092
        %v1491 = vsel %vm1477, %v1474, %v1094
        %v1492 = vsel %vm1477, %v1475, %v1096
        %v1493 = vsel %vm1477, %v1476, %v1098
        %vm1494 = vcmask 392192
        %v1495 = vsel %vm1494, %v1478, %v1132
        %v1496 = vsel %vm1494, %v1479, %v1134
        %v1497 = vsel %vm1494, %v1480, %v1136
        %v1498 = vsel %vm1494, %v1481, %v1138
        %v1499 = vsel %vm1494, %v1482, %v1140
        %v1500 = vsel %vm1494, %v1483, %v1142
        %v1501 = vsel %vm1494, %v1484, %v1144
        %v1502 = vsel %vm1494, %v1485, %v1146
        %v1503 = vsel %vm1494, %v1486, %v1148
        %v1504 = vsel %vm1494, %v1487, %v1150
        %v1505 = vsel %vm1494, %v1488, %v1152
        %v1506 = vsel %vm1494, %v1489, %v1154
        %v1507 = vsel %vm1494, %v1490, %v1156
        %v1508 = vsel %vm1494, %v1491, %v1158
        %v1509 = vsel %vm1494, %v1492, %v1160
        %v1510 = vsel %vm1494, %v1493, %v1162
        %vm1511 = vcmask 424960
        %v1512 = vsel %vm1511, %v1495, %v1196
        %v1513 = vsel %vm1511, %v1496, %v1198
        %v1514 = vsel %vm1511, %v1497, %v1200
        %v1515 = vsel %vm1511, %v1498, %v1202
        %v1516 = vsel %vm1511, %v1499, %v1204
        %v1517 = vsel %vm1511, %v1500, %v1206
        %v1518 = vsel %vm1511, %v1501, %v1208
        %v1519 = vsel %vm1511, %v1502, %v1210
        %v1520 = vsel %vm1511, %v1503, %v1212
        %v1521 = vsel %vm1511, %v1504, %v1214
        %v1522 = vsel %vm1511, %v1505, %v1216
        %v1523 = vsel %vm1511, %v1506, %v1218
        %v1524 = vsel %vm1511, %v1507, %v1220
        %v1525 = vsel %vm1511, %v1508, %v1222
        %v1526 = vsel %vm1511, %v1509, %v1224
        %v1527 = vsel %vm1511, %v1510, %v1226
        %vm1528 = vcmask 457728
        %v1529 = vsel %vm1528, %v1512, %v1260
        %v1530 = vsel %vm1528, %v1513, %v1262
        %v1531 = vsel %vm1528, %v1514, %v1264
        %v1532 = vsel %vm1528, %v1515, %v1266
        %v1533 = vsel %vm1528, %v1516, %v1268
        %v1534 = vsel %vm1528, %v1517, %v1270
        %v1535 = vsel %vm1528, %v1518, %v1272
        %v1536 = vsel %vm1528, %v1519, %v1274
        %v1537 = vsel %vm1528, %v1520, %v1276
        %v1538 = vsel %vm1528, %v1521, %v1278
        %v1539 = vsel %vm1528, %v1522, %v1280
        %v1540 = vsel %vm1528, %v1523, %v1282
        %v1541 = vsel %vm1528, %v1524, %v1284
        %v1542 = vsel %vm1528, %v1525, %v1286
        %v1543 = vsel %vm1528, %v1526, %v1288
        %v1544 = vsel %vm1528, %v1527, %v1290
        %v1545 = vld [vmem:[%s1] sm:$0xff]
        %v1546 = vld [vmem:[%s1 + $0x8] sm:$0xff]
        %v1547 = vld [vmem:[%s1 + $0x10] sm:$0xff]
        %v1548 = vld [vmem:[%s1 + $0x18] sm:$0xff]
        %v1549 = vld [vmem:[%s1 + $0x20] sm:$0xff]
        %v1550 = vld [vmem:[%s1 + $0x28] sm:$0xff]
        %v1551 = vld [vmem:[%s1 + $0x30] sm:$0xff]
        %v1552 = vld [vmem:[%s1 + $0x38] sm:$0xf]
        %v1553 = vld [vmem:[%s2] sm:$0x1]
        %v1555 = vlaneseq
        %v1556 = vshrl.u32 %v1555, 7
        %v1557 = vsub.s32 0, %v1556
        %v1558 = vrot.slane %v1553, %v1557
        %vm1560 = vcmask 490496
        %v1562 = vsel %vm1560, %v1529, 0
        %v1565 = vsel %vm1560, %v1530, 0
        %v1568 = vsel %vm1560, %v1531, 0
        %v1571 = vsel %vm1560, %v1532, 0
        %v1574 = vsel %vm1560, %v1533, 0
        %v1577 = vsel %vm1560, %v1534, 0
        %v1580 = vsel %vm1560, %v1535, 0
        %v1583 = vsel %vm1560, %v1536, 0
        %v1586 = vsel %vm1560, %v1537, 0
        %v1589 = vsel %vm1560, %v1538, 0
        %v1592 = vsel %vm1560, %v1539, 0
        %v1595 = vsel %vm1560, %v1540, 0
        %v1598 = vsel %vm1560, %v1541, 0
        %v1601 = vsel %vm1560, %v1542, 0
        %v1604 = vsel %vm1560, %v1543, 0
        %v1607 = vsel %vm1560, %v1544, 0
        %vm1609 = vcmask 1043456
        %v1611 = vsel %vm1609, %v1552, 0
        %1613 = vmatprep.subr.mxu0 0.0
        %1614 = vmatpush1.msra.mxu0 0.0
        %1615 = vmatprep.subr.mxu0 0.0
        %1616 = vmatpush1.msra.mxu0 0.0
        %1617 = vmatprep.subr.mxu0 0.0
        %1618 = vmatpush1.msra.mxu0 0.0
        %1619 = vmatprep.subr.mxu0 0.0
        %1620 = vmatpush1.msra.mxu0 0.0
        %1621 = vmatprep.subr.mxu0 0.0
        %1622 = vmatpush1.msra.mxu0 0.0
        %1623 = vmatprep.subr.mxu0 0.0
        %1624 = vmatpush1.msra.mxu0 0.0
        %1625 = vmatprep.subr.mxu0 0.0
        %1626 = vmatpush1.msra.mxu0 0.0
        %1627 = vmatprep.subr.mxu0 0.0
        %1628 = vmatpush1.msra.mxu0 0.0
        %1629 = vmatprep.subr.mxu0 0.0
        %1630 = vmatpush1.msra.mxu0 %v1611
        %1631 = vmatprep.subr.mxu0 0.0
        %1632 = vmatpush1.msra.mxu0 %v1551
        %1633 = vmatprep.subr.mxu0 0.0
        %1634 = vmatpush1.msra.mxu0 %v1550
        %1635 = vmatprep.subr.mxu0 0.0
        %1636 = vmatpush1.msra.mxu0 %v1549
        %1637 = vmatprep.subr.mxu0 0.0
        %1638 = vmatpush1.msra.mxu0 %v1548
        %1639 = vmatprep.subr.mxu0 0.0
        %1640 = vmatpush1.msra.mxu0 %v1547
        %1641 = vmatprep.subr.mxu0 0.0
        %1642 = vmatpush1.msra.mxu0 %v1546
        %1643 = vmatprep.subr.mxu0 0.0
        %1644 = vmatpush1.msra.mxu0 %v1545
        %1645 = vmatprep.subr.mxu0 0.0
        %1646 = vmatpush2.msra.mxu0 0.0
        %1647 = vmatprep.subr.mxu0 0.0
        %1648 = vmatpush2.msra.mxu0 0.0
        %1649 = vmatprep.subr.mxu0 0.0
        %1650 = vmatpush2.msra.mxu0 0.0
        %1651 = vmatprep.subr.mxu0 0.0
        %1652 = vmatpush2.msra.mxu0 0.0
        %1653 = vmatprep.subr.mxu0 0.0
        %1654 = vmatpush2.msra.mxu0 0.0
        %1655 = vmatprep.subr.mxu0 0.0
        %1656 = vmatpush2.msra.mxu0 0.0
        %1657 = vmatprep.subr.mxu0 0.0
        %1658 = vmatpush2.msra.mxu0 0.0
        %1659 = vmatprep.subr.mxu0 0.0
        %1660 = vmatpush2.msra.mxu0 0.0
        %1661 = vmatprep.subr.mxu0 0.0
        %1662 = vmatpush2.msra.mxu0 0.0
        %1663 = vmatprep.subr.mxu0 0.0
        %1664 = vmatpush2.msra.mxu0 0.0
        %1665 = vmatprep.subr.mxu0 0.0
        %1666 = vmatpush2.msra.mxu0 0.0
        %1667 = vmatprep.subr.mxu0 0.0
        %1668 = vmatpush2.msra.mxu0 0.0
        %1669 = vmatprep.subr.mxu0 0.0
        %1670 = vmatpush2.msra.mxu0 0.0
        %1671 = vmatprep.subr.mxu0 0.0
        %1672 = vmatpush2.msra.mxu0 0.0
        %1673 = vmatprep.subr.mxu0 0.0
        %1674 = vmatpush2.msra.mxu0 0.0
        %1675 = vmatprep.subr.mxu0 0.0
        %1676 = vmatpush2.msra.mxu0 0.0
        %1677 = vmatprep.mubr.f32.mxu0 0.0
        %1678 = vmatmul.mubr.f32.gmra.mxu0 %v1562
        %v1679 = vpop.f32.mrf.mxu0
        %v1680 = vadd.f32 %v1558, %v1679
        %v1681 = vpop.f32.mrf.mxu0
        %1682 = vmatprep.mubr.f32.mxu0 0.0
        %1683 = vmatmul.mubr.f32.gmra.mxu0 %v1565
        %v1684 = vpop.f32.mrf.mxu0
        %v1685 = vadd.f32 %v1558, %v1684
        %v1686 = vpop.f32.mrf.mxu0
        %1687 = vmatprep.mubr.f32.mxu0 0.0
        %1688 = vmatmul.mubr.f32.gmra.mxu0 %v1568
        %v1689 = vpop.f32.mrf.mxu0
        %v1690 = vadd.f32 %v1558, %v1689
        %v1691 = vpop.f32.mrf.mxu0
        %1692 = vmatprep.mubr.f32.mxu0 0.0
        %1693 = vmatmul.mubr.f32.gmra.mxu0 %v1571
        %v1694 = vpop.f32.mrf.mxu0
        %v1695 = vadd.f32 %v1558, %v1694
        %v1696 = vpop.f32.mrf.mxu0
        %1697 = vmatprep.mubr.f32.mxu0 0.0
        %1698 = vmatmul.mubr.f32.gmra.mxu0 %v1574
        %v1699 = vpop.f32.mrf.mxu0
        %v1700 = vadd.f32 %v1558, %v1699
        %v1701 = vpop.f32.mrf.mxu0
        %1702 = vmatprep.mubr.f32.mxu0 0.0
        %1703 = vmatmul.mubr.f32.gmra.mxu0 %v1577
        %v1704 = vpop.f32.mrf.mxu0
        %v1705 = vadd.f32 %v1558, %v1704
        %v1706 = vpop.f32.mrf.mxu0
        %1707 = vmatprep.mubr.f32.mxu0 0.0
        %1708 = vmatmul.mubr.f32.gmra.mxu0 %v1580
        %v1709 = vpop.f32.mrf.mxu0
        %v1710 = vadd.f32 %v1558, %v1709
        %v1711 = vpop.f32.mrf.mxu0
        %1712 = vmatprep.mubr.f32.mxu0 0.0
        %1713 = vmatmul.mubr.f32.gmra.mxu0 %v1583
        %v1714 = vpop.f32.mrf.mxu0
        %v1715 = vadd.f32 %v1558, %v1714
        %v1716 = vpop.f32.mrf.mxu0
        %1717 = vmatprep.mubr.f32.mxu0 0.0
        %1718 = vmatmul.mubr.f32.gmra.mxu0 %v1586
        %v1719 = vpop.f32.mrf.mxu0
        %v1720 = vadd.f32 %v1558, %v1719
        %v1721 = vpop.f32.mrf.mxu0
        %1722 = vmatprep.mubr.f32.mxu0 0.0
        %1723 = vmatmul.mubr.f32.gmra.mxu0 %v1589
        %v1724 = vpop.f32.mrf.mxu0
        %v1725 = vadd.f32 %v1558, %v1724
        %v1726 = vpop.f32.mrf.mxu0
        %1727 = vmatprep.mubr.f32.mxu0 0.0
        %1728 = vmatmul.mubr.f32.gmra.mxu0 %v1592
        %v1729 = vpop.f32.mrf.mxu0
        %v1730 = vadd.f32 %v1558, %v1729
        %v1731 = vpop.f32.mrf.mxu0
        %1732 = vmatprep.mubr.f32.mxu0 0.0
        %1733 = vmatmul.mubr.f32.gmra.mxu0 %v1595
        %v1734 = vpop.f32.mrf.mxu0
        %v1735 = vadd.f32 %v1558, %v1734
        %v1736 = vpop.f32.mrf.mxu0
        %1737 = vmatprep.mubr.f32.mxu0 0.0
        %1738 = vmatmul.mubr.f32.gmra.mxu0 %v1598
        %v1739 = vpop.f32.mrf.mxu0
        %v1740 = vadd.f32 %v1558, %v1739
        %v1741 = vpop.f32.mrf.mxu0
        %1742 = vmatprep.mubr.f32.mxu0 0.0
        %1743 = vmatmul.mubr.f32.gmra.mxu0 %v1601
        %v1744 = vpop.f32.mrf.mxu0
        %v1745 = vadd.f32 %v1558, %v1744
        %v1746 = vpop.f32.mrf.mxu0
        %1747 = vmatprep.mubr.f32.mxu0 0.0
        %1748 = vmatmul.mubr.f32.gmra.mxu0 %v1604
        %v1749 = vpop.f32.mrf.mxu0
        %v1750 = vadd.f32 %v1558, %v1749
        %v1751 = vpop.f32.mrf.mxu0
        %1752 = vmatprep.mubr.f32.mxu0 0.0
        %1753 = vmatmul.mubr.f32.gmra.mxu0 %v1607
        %v1754 = vpop.f32.mrf.mxu0
        %v1755 = vadd.f32 %v1558, %v1754
        %v1756 = vpop.f32.mrf.mxu0
        %1757 = vdwg.mxu0
        %v1758 = vmax.f32 %v1680, 0.0
        %v1759 = vmax.f32 %v1685, 0.0
        %v1760 = vmax.f32 %v1690, 0.0
        %v1761 = vmax.f32 %v1695, 0.0
        %v1762 = vmax.f32 %v1700, 0.0
        %v1763 = vmax.f32 %v1705, 0.0
        %v1764 = vmax.f32 %v1710, 0.0
        %v1765 = vmax.f32 %v1715, 0.0
        %v1766 = vmax.f32 %v1720, 0.0
        %v1767 = vmax.f32 %v1725, 0.0
        %v1768 = vmax.f32 %v1730, 0.0
        %v1769 = vmax.f32 %v1735, 0.0
        %v1770 = vmax.f32 %v1740, 0.0
        %v1771 = vmax.f32 %v1745, 0.0
        %v1772 = vmax.f32 %v1750, 0.0
        %v1773 = vmax.f32 %v1755, 0.0
        %v1774 = vmax.f32 %v1758, %v1760
        %v1775 = vmax.f32 %v1759, %v1761
        %v1776 = vmax.f32 %v1774, %v1762
        %v1777 = vmax.f32 %v1775, %v1763
        %v1778 = vmax.f32 %v1776, %v1764
        %v1779 = vmax.f32 %v1777, %v1765
        %v1780 = vmax.f32 %v1778, %v1766
        %v1781 = vmax.f32 %v1779, %v1767
        %v1782 = vmax.f32 %v1780, %v1768
        %v1783 = vmax.f32 %v1781, %v1769
        %v1784 = vmax.f32 %v1782, %v1770
        %v1785 = vmax.f32 %v1783, %v1771
        %v1786 = vmax.f32 %v1784, %v1772
        %v1787 = vmax.f32 %v1785, %v1773
        %v1790 = vrot.slane %v1786, 1
        %v1791 = vrot.slane %v1787, 1
        %v1794 = vmax.f32 %v1786, %v1790
        %v1795 = vmax.f32 %v1787, %v1791
        %v1796 = vrot.slane %v1786, 2
        %v1797 = vrot.slane %v1787, 2
        %v1800 = vmax.f32 %v1794, %v1796
        %v1801 = vmax.f32 %v1795, %v1797
        %v1802 = vrot.slane %v1786, 3
        %v1803 = vrot.slane %v1787, 3
        %v1806 = vmax.f32 %v1800, %v1802
        %v1807 = vmax.f32 %v1801, %v1803
        %v1808 = vrot.slane %v1786, 4
        %v1809 = vrot.slane %v1787, 4
        %v1812 = vmax.f32 %v1806, %v1808
        %v1813 = vmax.f32 %v1807, %v1809
        %v1814 = vrot.slane %v1786, 5
        %v1815 = vrot.slane %v1787, 5
        %v1818 = vmax.f32 %v1812, %v1814
        %v1819 = vmax.f32 %v1813, %v1815
        %v1820 = vrot.slane %v1786, 6
        %v1821 = vrot.slane %v1787, 6
        %v1824 = vmax.f32 %v1818, %v1820
        %v1825 = vmax.f32 %v1819, %v1821
        %v1826 = vrot.slane %v1786, 7
        %v1827 = vrot.slane %v1787, 7
        %v1830 = vmax.f32 %v1824, %v1826
        %v1831 = vmax.f32 %v1825, %v1827
        %v1834 = vrot.slane %v1831, 7
        %vm1835 = vcmask 1041409
        %v1836 = vsel %vm1835, %v1834, %v1830
        %vm1838 = vcmask 58368
        %1839 = vst.msk [vmem:[%s163] sm:$0x3] %vm1838, %v1836
        %s1840 = sand.u32 %s93, 1
        %s1841 = scalar_lea.sflag [#allocation3], %s1840
        %s1842 = sand.u32 %s93, 1
        %s1843 = smul.addr %s1842, 2
        %s1844 = scalar_lea.vmem [#allocation2], %s1843
        // Predicated region
        $region33: #{tpu_custom_call.1} parent=31 // pred_check
          %p1845 = pneg %p103
        $region34: #{tpu_custom_call.1} parent=31 // pred_check_branch
          %1847 = sbr.rel (%p1845) target = $region36
        $region35: #{tpu_custom_call.1} parent=31 // pred_region
          %s1849 = ssub.s32 32, 32
          %1850 = vsyncadd %s1841, %s1849
          %s1851 = smul.addr %s17, 32
          %s1852 = scalar_lea.hbm %s3, %s1851
          %s1854 = sshll.u32 %s1844, 4
          %s1855 = int_to_ptr.vmem [resolvable:$true] %s1854
          %1857 = dma.vmem_to_hbm [thread:$0]  %s1855, 32, %s1852, %s1841
        $region36: #{tpu_custom_call.1} parent=31 // pred_fallthru
          _
      $region32: #{tpu_custom_call.1} parent=5 // pred_fallthru
        _
      %p1858 = scmp.le.s32.totalorder 2, %s12
      // Predicated region
      $region37: #{tpu_custom_call.1} parent=5 // pred_check
        %p1859 = pneg %p1858
      $region38: #{tpu_custom_call.1} parent=5 // pred_check_branch
        %1861 = sbr.rel (%p1859) target = $region40
      $region39: #{tpu_custom_call.1} parent=5 // pred_region
        %s1862 = ssub.s32 %s12, 2
        // Predicated region
        $region41: #{tpu_custom_call.1} parent=39 // pred_check
          %p1863 = pneg %p109
        $region42: #{tpu_custom_call.1} parent=39 // pred_check_branch
          %1865 = sbr.rel (%p1863) target = $region44
        $region43: #{tpu_custom_call.1} parent=39 // pred_region
          %s1866 = sand.u32 %s94, 1
          %s1867 = scalar_lea.sflag [#allocation3], %s1866
          %s1868 = sand.u32 %s94, 1
          %s1869 = smul.addr %s1868, 2
          %s1870 = scalar_lea.vmem [#allocation2], %s1869
          %1871 = dma.done %s1867, 32
        $region44: #{tpu_custom_call.1} parent=39 // pred_fallthru
          _
      $region40: #{tpu_custom_call.1} parent=5 // pred_fallthru
        _
    $region6: #{tpu_custom_call.1} parent=1 // loop_footer
      %s16 = sadd.s32 1, %s12
    $region7: #{tpu_custom_call.1} parent=1 // loop_footer_branch
      %11 = sbr.rel target = $region3
    $region8: #{tpu_custom_call.1} parent=1 // loop_exit
      _
    %1872 = vsyncpa [#allocation3], 1
    %s1873 = scalar_lea.sflag [#allocation3], 1
    %1874 = vsyncpa %s1873, 1

</llo_original>
